<compile_context>
chip_gen: v7x
topology: tpu7x:2x2x1
jax: 0.10.0
libtpu: 0.0.40
codegen_flags: <defaults>
</compile_context>

<pallas_src>
import numpy as np
import jax
import jax.numpy as jnp
from jax.experimental import pallas as pl
from jax.experimental.pallas import tpu as pltpu

EPS = 1e-5  # PyTorch BatchNorm2d default eps


def make_params(key, in_channels, out_channels, kernel_size):
    K, Cin, Cout = kernel_size, in_channels, out_channels
    ks = jax.random.split(key, 14)
    p = {
        # conv weights in HWIO layout
        "w1": jax.random.normal(ks[0], (K, K, Cin, Cout), jnp.float32)
        * (1.0 / np.sqrt(K * K * Cin)),
        "b1": jax.random.normal(ks[1], (Cout,), jnp.float32) * 0.1,
        "w2": jax.random.normal(ks[2], (K, K, Cout, Cout), jnp.float32)
        * (1.0 / np.sqrt(K * K * Cout)),
        "b2": jax.random.normal(ks[3], (Cout,), jnp.float32) * 0.1,
        # BatchNorm (inference: running stats)
        "g1": 1.0 + 0.1 * jax.random.normal(ks[4], (Cout,), jnp.float32),
        "be1": 0.1 * jax.random.normal(ks[5], (Cout,), jnp.float32),
        "mu1": 0.1 * jax.random.normal(ks[6], (Cout,), jnp.float32),
        "v1": 1.0 + 0.2 * jax.random.uniform(ks[7], (Cout,), jnp.float32),
        "g2": 1.0 + 0.1 * jax.random.normal(ks[8], (Cout,), jnp.float32),
        "be2": 0.1 * jax.random.normal(ks[9], (Cout,), jnp.float32),
        "mu2": 0.1 * jax.random.normal(ks[10], (Cout,), jnp.float32),
        "v2": 1.0 + 0.2 * jax.random.uniform(ks[11], (Cout,), jnp.float32),
    }
    return p


def _pick_chunk(n, hw, howo, cap=None):
    """Images per grid step.

    Fold several small images into one matmul (wider lane/free dimension),
    but keep every block lane-extent 128-aligned whenever the batch is split
    across multiple grid steps.
    """
    target = max(1, 4096 // max(hw, 1))          # aim for ~4k lanes per matmul
    nb = max(1, min(n, target))
    if cap is not None:
        nb = max(1, min(nb, cap))
    if nb >= n and cap is None:
        return n                                  # single step: blocks == full arrays
    while nb > 1 and ((nb * hw) % 128 or (nb * howo) % 128):
        nb -= 1
    if (nb * hw) % 128 or (nb * howo) % 128:
        return n                                  # fall back to one big step
    return nb


def motion_block_ts_pallas(x_nchw, mask_nchw, p, *, max_images_per_step=None):
    N, Cin, H, W = x_nchw.shape
    K = p["w1"].shape[0]
    Cout = p["w1"].shape[3]
    assert K % 2 == 1, "only odd kernel sizes reproduce PyTorch padding=K//2"
    assert H % 2 == 0 and W % 2 == 0, "AvgPool2d(2,2) path assumes even H, W"
    Pd = K // 2
    Ho, Wo = H // 2, W // 2
    HW = H * W
    HoWo = Ho * Wo

    # ---- batch chunking -----------------------------------------------------
    nb = _pick_chunk(N, HW, HoWo, cap=max_images_per_step)
    n_pad = ((N + nb - 1) // nb) * nb
    grid = n_pad // nb
    nbhw = nb * HW

    xf = x_nchw.astype(jnp.float32)
    mf = mask_nchw.astype(jnp.float32)
    if n_pad != N:
        pad = [(0, n_pad - N), (0, 0), (0, 0), (0, 0)]
        xf = jnp.pad(xf, pad)
        mf = jnp.pad(mf, pad)

    # channels-on-sublanes / flattened-pixels-on-lanes layout
    x_cm = jnp.transpose(xf, (1, 0, 2, 3)).reshape(Cin, n_pad * HW)
    m_cm = jnp.transpose(mf, (1, 0, 2, 3)).reshape(1, n_pad * HW)

    # ---- fold BatchNorm (inference) into the conv weights / biases ----------
    s1 = p["g1"] / jnp.sqrt(p["v1"] + EPS)
    s2 = p["g2"] / jnp.sqrt(p["v2"] + EPS)
    # (K,K,Ci,Co) -> (Co, K*K*Ci): tap-major, input-channel-minor columns
    w1m = (p["w1"] * s1).transpose(3, 0, 1, 2).reshape(Cout, K * K * Cin)
    w2m = (p["w2"] * s2).transpose(3, 0, 1, 2).reshape(Cout, K * K * Cout)
    w1m = w1m.astype(jnp.bfloat16)
    w2m = w2m.astype(jnp.bfloat16)
    b1f = ((p["b1"] - p["mu1"]) * s1 + p["be1"]).reshape(Cout, 1).astype(jnp.float32)
    b2f = ((p["b2"] - p["mu2"]) * s2 + p["be2"]).reshape(Cout, 1).astype(jnp.float32)

    # ---- per-tap edge-validity masks over the flattened (nb*H*W) lane axis --
    offs = [(ky - Pd, kx - Pd) for ky in range(K) for kx in range(K)]
    r = np.arange(nbhw) % HW
    hh, ww = r // W, r % W
    tap_np = np.stack(
        [((hh + dy >= 0) & (hh + dy < H) & (ww + dx >= 0) & (ww + dx < W))
         for (dy, dx) in offs]
    ).astype(np.float32).reshape(K * K, 1, nbhw)
    tap = jnp.asarray(tap_np)                      # (K*K, 1, nb*HW)

    def _rot(v, off):
        """out[:, i] = v[:, (i + off) % n] — lane rotation via slice+concat."""
        n = v.shape[-1]
        s = off % n
        if s == 0:
            return v
        return jnp.concatenate([v[:, s:], v[:, :s]], axis=1)

    def kernel(x_ref, m_ref, tap_ref, w1_ref, b1_ref, w2_ref, b2_ref,
               out_ref, tbuf):
        def im2col(act):                            # act: (C, nbhw) f32
            cols = []
            for ti, (dy, dx) in enumerate(offs):
                col = _rot(act, dy * W + dx) * tap_ref[ti]   # (C,nbhw)*(1,nbhw)
                cols.append(col.astype(jnp.bfloat16))
            return jnp.concatenate(cols, axis=0)    # (K*K*C, nbhw) bf16

        # ---- Conv1 (+ folded BN1) + tanh ------------------------------------
        acc1 = jnp.dot(w1_ref[...], im2col(x_ref[...]),
                       preferred_element_type=jnp.float32)
        h1 = jnp.tanh(acc1 + b1_ref[...])           # (Cout, nbhw) f32

        # ---- Conv2 (+ folded BN2), attention mask, tanh ----------------------
        acc2 = jnp.dot(w2_ref[...], im2col(h1),
                       preferred_element_type=jnp.float32)
        a = jnp.tanh((acc2 + b2_ref[...]) * m_ref[...])

        # Dropout2d(0.5): identity in eval mode.
        # TODO(synk): train-mode channel dropout (zero whole channels, 2x scale)
        # is not implemented.

        # ---- AvgPool2d(2,2): 2x2 block sums via 3 lane rotations, then pick
        # the (even h, even w) lanes with stride-2 sublane reads of a scratch.
        blk = a + _rot(a, 1) + _rot(a, W) + _rot(a, W + 1)
        tbuf[...] = jnp.transpose(blk * 0.25)       # (nbhw, Cout)

        rows = []
        for img in range(nb):
            for oh in range(Ho):
                base = img * HW + 2 * oh * W
                rows.append(tbuf[pl.ds(base, Wo, stride=2), :])   # (Wo, Cout)
        pooled = jnp.concatenate(rows, axis=0)      # (nb*Ho*Wo, Cout)
        out_ref[...] = jnp.transpose(pooled)        # (Cout, nb*Ho*Wo) lane-dense

    out_cm = pl.pallas_call(
        kernel,
        out_shape=jax.ShapeDtypeStruct((Cout, n_pad * HoWo), jnp.float32),
        grid_spec=pltpu.PrefetchScalarGridSpec(
            num_scalar_prefetch=0,
            grid=(grid,),
            in_specs=[
                pl.BlockSpec((Cin, nbhw), lambda b: (0, b)),          # x
                pl.BlockSpec((1, nbhw), lambda b: (0, b)),            # mask
                pl.BlockSpec((K * K, 1, nbhw), lambda b: (0, 0, 0)),  # tap masks
                pl.BlockSpec((Cout, K * K * Cin), lambda b: (0, 0)),  # w1 (folded)
                pl.BlockSpec((Cout, 1), lambda b: (0, 0)),            # b1 (folded)
                pl.BlockSpec((Cout, K * K * Cout), lambda b: (0, 0)), # w2 (folded)
                pl.BlockSpec((Cout, 1), lambda b: (0, 0)),            # b2 (folded)
            ],
            out_specs=pl.BlockSpec((Cout, nb * HoWo), lambda b: (0, b)),
            scratch_shapes=[pltpu.VMEM((nbhw, Cout), jnp.float32)],
        ),
        compiler_params=pltpu.CompilerParams(
            dimension_semantics=("parallel",)),
    )(x_cm, m_cm, tap, w1m, b1f, w2m, b2f)

    # layout plumbing back to PyTorch NCHW
    out = out_cm.reshape(Cout, n_pad, Ho, Wo).transpose(1, 0, 2, 3)
    return out[:N]


def reference_forward(x_nchw, mask_nchw, p):
    """Pure-JAX f32 reference (NHWC internally), matches PyTorch eval forward."""
    x = jnp.transpose(x_nchw, (0, 2, 3, 1)).astype(jnp.float32)
    m = jnp.transpose(mask_nchw, (0, 2, 3, 1)).astype(jnp.float32)

    def conv(a, w, b):
        y = jax.lax.conv_general_dilated(
            a, w, (1, 1), "SAME",
            dimension_numbers=("NHWC", "HWIO", "NHWC"),
            precision=jax.lax.Precision.HIGHEST,
        )
        return y + b

    def bn(a, g, be, mu, v):
        return (a - mu) * jax.lax.rsqrt(v + EPS) * g + be

    y = jnp.tanh(bn(conv(x, p["w1"], p["b1"]), p["g1"], p["be1"], p["mu1"], p["v1"]))
    y = bn(conv(y, p["w2"], p["b2"]), p["g2"], p["be2"], p["mu2"], p["v2"])
    y = jnp.tanh(y * m)
    N, H, W, C = y.shape
    y = y.reshape(N, H // 2, 2, W // 2, 2, C).mean(axis=(2, 4))
    return jnp.transpose(y, (0, 3, 1, 2))


if __name__ == "__main__":
    key = jax.random.PRNGKey(0)
    kx, km, kp = jax.random.split(key, 3)

    N, Cin, Cout, H, W, K = 2, 4, 8, 16, 16, 3
    x = jax.random.normal(kx, (N, Cin, H, W), jnp.float32)
    mask = jax.nn.sigmoid(jax.random.normal(km, (N, 1, H, W), jnp.float32))
    params = make_params(kp, Cin, Cout, K)

    out = motion_block_ts_pallas(x, mask, params)
    jax.block_until_ready(out)
    ref = reference_forward(x, mask, params)
    # bf16 MXU inputs with f32 accumulation -> loosened tolerance vs. f32 ref.
    np.testing.assert_allclose(np.asarray(out), np.asarray(ref), rtol=3e-2, atol=3e-2)

    # Also exercise batch chunking, batch padding and a multi-step grid.
    N2 = 5
    kx2, km2 = jax.random.split(kx)
    x2 = jax.random.normal(kx2, (N2, Cin, H, W), jnp.float32)
    mask2 = jax.nn.sigmoid(jax.random.normal(km2, (N2, 1, H, W), jnp.float32))
    out2 = motion_block_ts_pallas(x2, mask2, params, max_images_per_step=2)
    jax.block_until_ready(out2)
    ref2 = reference_forward(x2, mask2, params)
    np.testing.assert_allclose(np.asarray(out2), np.asarray(ref2), rtol=3e-2, atol=3e-2)

    print("KERNEL_OK")
</pallas_src>

<mosaic_0001>
module attributes {stable_mosaic.version = 11 : i64} {
  func.func @kernel(%arg0: i32, %arg1: memref<4x512xf32, #tpu.memory_space<vmem>>, %arg2: memref<1x512xf32, #tpu.memory_space<vmem>>, %arg3: memref<9x1x512xf32, #tpu.memory_space<vmem>>, %arg4: memref<8x36xbf16, #tpu.memory_space<vmem>>, %arg5: memref<8x1xf32, #tpu.memory_space<vmem>>, %arg6: memref<8x72xbf16, #tpu.memory_space<vmem>>, %arg7: memref<8x1xf32, #tpu.memory_space<vmem>>, %arg8: memref<8x128xf32, #tpu.memory_space<vmem>>, %arg9: memref<512x8xf32, #tpu.memory_space<vmem>>) attributes {dimension_semantics = [#tpu.dimension_semantics<parallel>], iteration_bounds = array<i64: 1>, scalar_prefetch = 0 : i64, scratch_operands = 1 : i64, tpu.core_type = #tpu.core_type<tc>, window_params = [{transform_indices = @transform_0, window_bounds = array<i64: 4, 512>}, {transform_indices = @transform_1, window_bounds = array<i64: 1, 512>}, {pipeline_mode = #tpu.pipeline_mode<synchronous>, transform_indices = @transform_2, window_bounds = array<i64: 9, 1, 512>}, {pipeline_mode = #tpu.pipeline_mode<synchronous>, transform_indices = @transform_3, window_bounds = array<i64: 8, 36>}, {pipeline_mode = #tpu.pipeline_mode<synchronous>, transform_indices = @transform_4, window_bounds = array<i64: 8, 1>}, {pipeline_mode = #tpu.pipeline_mode<synchronous>, transform_indices = @transform_5, window_bounds = array<i64: 8, 72>}, {pipeline_mode = #tpu.pipeline_mode<synchronous>, transform_indices = @transform_6, window_bounds = array<i64: 8, 1>}, {transform_indices = @transform_7, window_bounds = array<i64: 8, 128>}]} {
    %c0 = arith.constant 0 : index
    %c0_0 = arith.constant 0 : index
    %0 = vector.load %arg4[%c0, %c0_0] : memref<8x36xbf16, #tpu.memory_space<vmem>>, vector<8x36xbf16>
    %c0_1 = arith.constant 0 : index
    %c0_2 = arith.constant 0 : index
    %1 = vector.load %arg1[%c0_1, %c0_2] : memref<4x512xf32, #tpu.memory_space<vmem>>, vector<4x512xf32>
    %2 = vector.extract_strided_slice %1 {offsets = [0, 495], sizes = [4, 17], strides = [1, 1]} : vector<4x512xf32> to vector<4x17xf32>
    %3 = vector.extract_strided_slice %1 {offsets = [0, 0], sizes = [4, 495], strides = [1, 1]} : vector<4x512xf32> to vector<4x495xf32>
    %4 = tpu.concatenate %2, %3 in 1 : vector<4x17xf32>, vector<4x495xf32> -> vector<4x512xf32>
    %c0_3 = arith.constant 0 : index
    %c0_4 = arith.constant 0 : index
    %c0_5 = arith.constant 0 : index
    %5 = vector.load %arg3[%c0_3, %c0_4, %c0_5] : memref<9x1x512xf32, #tpu.memory_space<vmem>>, vector<1x1x512xf32>
    %6 = vector.shape_cast %5 : vector<1x1x512xf32> to vector<1x512xf32>
    %7 = vector.broadcast %6 : vector<1x512xf32> to vector<4x512xf32>
    %8 = arith.mulf %4, %7 : vector<4x512xf32>
    %9 = arith.truncf %8 : vector<4x512xf32> to vector<4x512xbf16>
    %10 = vector.extract_strided_slice %1 {offsets = [0, 496], sizes = [4, 16], strides = [1, 1]} : vector<4x512xf32> to vector<4x16xf32>
    %11 = vector.extract_strided_slice %1 {offsets = [0, 0], sizes = [4, 496], strides = [1, 1]} : vector<4x512xf32> to vector<4x496xf32>
    %12 = tpu.concatenate %10, %11 in 1 : vector<4x16xf32>, vector<4x496xf32> -> vector<4x512xf32>
    %c1 = arith.constant 1 : index
    %c0_6 = arith.constant 0 : index
    %c0_7 = arith.constant 0 : index
    %13 = vector.load %arg3[%c1, %c0_6, %c0_7] : memref<9x1x512xf32, #tpu.memory_space<vmem>>, vector<1x1x512xf32>
    %14 = vector.shape_cast %13 : vector<1x1x512xf32> to vector<1x512xf32>
    %15 = vector.broadcast %14 : vector<1x512xf32> to vector<4x512xf32>
    %16 = arith.mulf %12, %15 : vector<4x512xf32>
    %17 = arith.truncf %16 : vector<4x512xf32> to vector<4x512xbf16>
    %18 = vector.extract_strided_slice %1 {offsets = [0, 497], sizes = [4, 15], strides = [1, 1]} : vector<4x512xf32> to vector<4x15xf32>
    %19 = vector.extract_strided_slice %1 {offsets = [0, 0], sizes = [4, 497], strides = [1, 1]} : vector<4x512xf32> to vector<4x497xf32>
    %20 = tpu.concatenate %18, %19 in 1 : vector<4x15xf32>, vector<4x497xf32> -> vector<4x512xf32>
    %c2 = arith.constant 2 : index
    %c0_8 = arith.constant 0 : index
    %c0_9 = arith.constant 0 : index
    %21 = vector.load %arg3[%c2, %c0_8, %c0_9] : memref<9x1x512xf32, #tpu.memory_space<vmem>>, vector<1x1x512xf32>
    %22 = vector.shape_cast %21 : vector<1x1x512xf32> to vector<1x512xf32>
    %23 = vector.broadcast %22 : vector<1x512xf32> to vector<4x512xf32>
    %24 = arith.mulf %20, %23 : vector<4x512xf32>
    %25 = arith.truncf %24 : vector<4x512xf32> to vector<4x512xbf16>
    %26 = vector.extract_strided_slice %1 {offsets = [0, 511], sizes = [4, 1], strides = [1, 1]} : vector<4x512xf32> to vector<4x1xf32>
    %27 = vector.extract_strided_slice %1 {offsets = [0, 0], sizes = [4, 511], strides = [1, 1]} : vector<4x512xf32> to vector<4x511xf32>
    %28 = tpu.concatenate %26, %27 in 1 : vector<4x1xf32>, vector<4x511xf32> -> vector<4x512xf32>
    %c3 = arith.constant 3 : index
    %c0_10 = arith.constant 0 : index
    %c0_11 = arith.constant 0 : index
    %29 = vector.load %arg3[%c3, %c0_10, %c0_11] : memref<9x1x512xf32, #tpu.memory_space<vmem>>, vector<1x1x512xf32>
    %30 = vector.shape_cast %29 : vector<1x1x512xf32> to vector<1x512xf32>
    %31 = vector.broadcast %30 : vector<1x512xf32> to vector<4x512xf32>
    %32 = arith.mulf %28, %31 : vector<4x512xf32>
    %33 = arith.truncf %32 : vector<4x512xf32> to vector<4x512xbf16>
    %c4 = arith.constant 4 : index
    %c0_12 = arith.constant 0 : index
    %c0_13 = arith.constant 0 : index
    %34 = vector.load %arg3[%c4, %c0_12, %c0_13] : memref<9x1x512xf32, #tpu.memory_space<vmem>>, vector<1x1x512xf32>
    %35 = vector.shape_cast %34 : vector<1x1x512xf32> to vector<1x512xf32>
    %36 = vector.broadcast %35 : vector<1x512xf32> to vector<4x512xf32>
    %37 = arith.mulf %1, %36 : vector<4x512xf32>
    %38 = arith.truncf %37 : vector<4x512xf32> to vector<4x512xbf16>
    %39 = vector.extract_strided_slice %1 {offsets = [0, 1], sizes = [4, 511], strides = [1, 1]} : vector<4x512xf32> to vector<4x511xf32>
    %40 = vector.extract_strided_slice %1 {offsets = [0, 0], sizes = [4, 1], strides = [1, 1]} : vector<4x512xf32> to vector<4x1xf32>
    %41 = tpu.concatenate %39, %40 in 1 : vector<4x511xf32>, vector<4x1xf32> -> vector<4x512xf32>
    %c5 = arith.constant 5 : index
    %c0_14 = arith.constant 0 : index
    %c0_15 = arith.constant 0 : index
    %42 = vector.load %arg3[%c5, %c0_14, %c0_15] : memref<9x1x512xf32, #tpu.memory_space<vmem>>, vector<1x1x512xf32>
    %43 = vector.shape_cast %42 : vector<1x1x512xf32> to vector<1x512xf32>
    %44 = vector.broadcast %43 : vector<1x512xf32> to vector<4x512xf32>
    %45 = arith.mulf %41, %44 : vector<4x512xf32>
    %46 = arith.truncf %45 : vector<4x512xf32> to vector<4x512xbf16>
    %47 = vector.extract_strided_slice %1 {offsets = [0, 15], sizes = [4, 497], strides = [1, 1]} : vector<4x512xf32> to vector<4x497xf32>
    %48 = vector.extract_strided_slice %1 {offsets = [0, 0], sizes = [4, 15], strides = [1, 1]} : vector<4x512xf32> to vector<4x15xf32>
    %49 = tpu.concatenate %47, %48 in 1 : vector<4x497xf32>, vector<4x15xf32> -> vector<4x512xf32>
    %c6 = arith.constant 6 : index
    %c0_16 = arith.constant 0 : index
    %c0_17 = arith.constant 0 : index
    %50 = vector.load %arg3[%c6, %c0_16, %c0_17] : memref<9x1x512xf32, #tpu.memory_space<vmem>>, vector<1x1x512xf32>
    %51 = vector.shape_cast %50 : vector<1x1x512xf32> to vector<1x512xf32>
    %52 = vector.broadcast %51 : vector<1x512xf32> to vector<4x512xf32>
    %53 = arith.mulf %49, %52 : vector<4x512xf32>
    %54 = arith.truncf %53 : vector<4x512xf32> to vector<4x512xbf16>
    %55 = vector.extract_strided_slice %1 {offsets = [0, 16], sizes = [4, 496], strides = [1, 1]} : vector<4x512xf32> to vector<4x496xf32>
    %56 = vector.extract_strided_slice %1 {offsets = [0, 0], sizes = [4, 16], strides = [1, 1]} : vector<4x512xf32> to vector<4x16xf32>
    %57 = tpu.concatenate %55, %56 in 1 : vector<4x496xf32>, vector<4x16xf32> -> vector<4x512xf32>
    %c7 = arith.constant 7 : index
    %c0_18 = arith.constant 0 : index
    %c0_19 = arith.constant 0 : index
    %58 = vector.load %arg3[%c7, %c0_18, %c0_19] : memref<9x1x512xf32, #tpu.memory_space<vmem>>, vector<1x1x512xf32>
    %59 = vector.shape_cast %58 : vector<1x1x512xf32> to vector<1x512xf32>
    %60 = vector.broadcast %59 : vector<1x512xf32> to vector<4x512xf32>
    %61 = arith.mulf %57, %60 : vector<4x512xf32>
    %62 = arith.truncf %61 : vector<4x512xf32> to vector<4x512xbf16>
    %63 = vector.extract_strided_slice %1 {offsets = [0, 17], sizes = [4, 495], strides = [1, 1]} : vector<4x512xf32> to vector<4x495xf32>
    %64 = vector.extract_strided_slice %1 {offsets = [0, 0], sizes = [4, 17], strides = [1, 1]} : vector<4x512xf32> to vector<4x17xf32>
    %65 = tpu.concatenate %63, %64 in 1 : vector<4x495xf32>, vector<4x17xf32> -> vector<4x512xf32>
    %c8 = arith.constant 8 : index
    %c0_20 = arith.constant 0 : index
    %c0_21 = arith.constant 0 : index
    %66 = vector.load %arg3[%c8, %c0_20, %c0_21] : memref<9x1x512xf32, #tpu.memory_space<vmem>>, vector<1x1x512xf32>
    %67 = vector.shape_cast %66 : vector<1x1x512xf32> to vector<1x512xf32>
    %68 = vector.broadcast %67 : vector<1x512xf32> to vector<4x512xf32>
    %69 = arith.mulf %65, %68 : vector<4x512xf32>
    %70 = arith.truncf %69 : vector<4x512xf32> to vector<4x512xbf16>
    %71 = tpu.concatenate %9, %17, %25, %33, %38, %46, %54, %62, %70 in 0 : vector<4x512xbf16>, vector<4x512xbf16>, vector<4x512xbf16>, vector<4x512xbf16>, vector<4x512xbf16>, vector<4x512xbf16>, vector<4x512xbf16>, vector<4x512xbf16>, vector<4x512xbf16> -> vector<36x512xbf16>
    %cst = arith.constant dense<0.000000e+00> : vector<8x512xf32>
    %72 = tpu.matmul %0, %71, %cst {dimension_numbers = #tpu.dot_dimension_numbers<[1], [0], [0], [1], [0, 0, 1, 1], [], []>} : vector<8x36xbf16>, vector<36x512xbf16>, vector<8x512xf32> -> vector<8x512xf32>
    %c0_22 = arith.constant 0 : index
    %c0_23 = arith.constant 0 : index
    %73 = vector.load %arg5[%c0_22, %c0_23] : memref<8x1xf32, #tpu.memory_space<vmem>>, vector<8x1xf32>
    %74 = vector.broadcast %73 : vector<8x1xf32> to vector<8x512xf32>
    %75 = arith.addf %72, %74 : vector<8x512xf32>
    %76 = math.tanh %75 : vector<8x512xf32>
    %c0_24 = arith.constant 0 : index
    %c0_25 = arith.constant 0 : index
    %77 = vector.load %arg6[%c0_24, %c0_25] : memref<8x72xbf16, #tpu.memory_space<vmem>>, vector<8x72xbf16>
    %78 = vector.extract_strided_slice %76 {offsets = [0, 495], sizes = [8, 17], strides = [1, 1]} : vector<8x512xf32> to vector<8x17xf32>
    %79 = vector.extract_strided_slice %76 {offsets = [0, 0], sizes = [8, 495], strides = [1, 1]} : vector<8x512xf32> to vector<8x495xf32>
    %80 = tpu.concatenate %78, %79 in 1 : vector<8x17xf32>, vector<8x495xf32> -> vector<8x512xf32>
    %c0_26 = arith.constant 0 : index
    %c0_27 = arith.constant 0 : index
    %c0_28 = arith.constant 0 : index
    %81 = vector.load %arg3[%c0_26, %c0_27, %c0_28] : memref<9x1x512xf32, #tpu.memory_space<vmem>>, vector<1x1x512xf32>
    %82 = vector.shape_cast %81 : vector<1x1x512xf32> to vector<1x512xf32>
    %83 = vector.broadcast %82 : vector<1x512xf32> to vector<8x512xf32>
    %84 = arith.mulf %80, %83 : vector<8x512xf32>
    %85 = arith.truncf %84 : vector<8x512xf32> to vector<8x512xbf16>
    %86 = vector.extract_strided_slice %76 {offsets = [0, 496], sizes = [8, 16], strides = [1, 1]} : vector<8x512xf32> to vector<8x16xf32>
    %87 = vector.extract_strided_slice %76 {offsets = [0, 0], sizes = [8, 496], strides = [1, 1]} : vector<8x512xf32> to vector<8x496xf32>
    %88 = tpu.concatenate %86, %87 in 1 : vector<8x16xf32>, vector<8x496xf32> -> vector<8x512xf32>
    %c1_29 = arith.constant 1 : index
    %c0_30 = arith.constant 0 : index
    %c0_31 = arith.constant 0 : index
    %89 = vector.load %arg3[%c1_29, %c0_30, %c0_31] : memref<9x1x512xf32, #tpu.memory_space<vmem>>, vector<1x1x512xf32>
    %90 = vector.shape_cast %89 : vector<1x1x512xf32> to vector<1x512xf32>
    %91 = vector.broadcast %90 : vector<1x512xf32> to vector<8x512xf32>
    %92 = arith.mulf %88, %91 : vector<8x512xf32>
    %93 = arith.truncf %92 : vector<8x512xf32> to vector<8x512xbf16>
    %94 = vector.extract_strided_slice %76 {offsets = [0, 497], sizes = [8, 15], strides = [1, 1]} : vector<8x512xf32> to vector<8x15xf32>
    %95 = vector.extract_strided_slice %76 {offsets = [0, 0], sizes = [8, 497], strides = [1, 1]} : vector<8x512xf32> to vector<8x497xf32>
    %96 = tpu.concatenate %94, %95 in 1 : vector<8x15xf32>, vector<8x497xf32> -> vector<8x512xf32>
    %c2_32 = arith.constant 2 : index
    %c0_33 = arith.constant 0 : index
    %c0_34 = arith.constant 0 : index
    %97 = vector.load %arg3[%c2_32, %c0_33, %c0_34] : memref<9x1x512xf32, #tpu.memory_space<vmem>>, vector<1x1x512xf32>
    %98 = vector.shape_cast %97 : vector<1x1x512xf32> to vector<1x512xf32>
    %99 = vector.broadcast %98 : vector<1x512xf32> to vector<8x512xf32>
    %100 = arith.mulf %96, %99 : vector<8x512xf32>
    %101 = arith.truncf %100 : vector<8x512xf32> to vector<8x512xbf16>
    %102 = vector.extract_strided_slice %76 {offsets = [0, 511], sizes = [8, 1], strides = [1, 1]} : vector<8x512xf32> to vector<8x1xf32>
    %103 = vector.extract_strided_slice %76 {offsets = [0, 0], sizes = [8, 511], strides = [1, 1]} : vector<8x512xf32> to vector<8x511xf32>
    %104 = tpu.concatenate %102, %103 in 1 : vector<8x1xf32>, vector<8x511xf32> -> vector<8x512xf32>
    %c3_35 = arith.constant 3 : index
    %c0_36 = arith.constant 0 : index
    %c0_37 = arith.constant 0 : index
    %105 = vector.load %arg3[%c3_35, %c0_36, %c0_37] : memref<9x1x512xf32, #tpu.memory_space<vmem>>, vector<1x1x512xf32>
    %106 = vector.shape_cast %105 : vector<1x1x512xf32> to vector<1x512xf32>
    %107 = vector.broadcast %106 : vector<1x512xf32> to vector<8x512xf32>
    %108 = arith.mulf %104, %107 : vector<8x512xf32>
    %109 = arith.truncf %108 : vector<8x512xf32> to vector<8x512xbf16>
    %c4_38 = arith.constant 4 : index
    %c0_39 = arith.constant 0 : index
    %c0_40 = arith.constant 0 : index
    %110 = vector.load %arg3[%c4_38, %c0_39, %c0_40] : memref<9x1x512xf32, #tpu.memory_space<vmem>>, vector<1x1x512xf32>
    %111 = vector.shape_cast %110 : vector<1x1x512xf32> to vector<1x512xf32>
    %112 = vector.broadcast %111 : vector<1x512xf32> to vector<8x512xf32>
    %113 = arith.mulf %76, %112 : vector<8x512xf32>
    %114 = arith.truncf %113 : vector<8x512xf32> to vector<8x512xbf16>
    %115 = vector.extract_strided_slice %76 {offsets = [0, 1], sizes = [8, 511], strides = [1, 1]} : vector<8x512xf32> to vector<8x511xf32>
    %116 = vector.extract_strided_slice %76 {offsets = [0, 0], sizes = [8, 1], strides = [1, 1]} : vector<8x512xf32> to vector<8x1xf32>
    %117 = tpu.concatenate %115, %116 in 1 : vector<8x511xf32>, vector<8x1xf32> -> vector<8x512xf32>
    %c5_41 = arith.constant 5 : index
    %c0_42 = arith.constant 0 : index
    %c0_43 = arith.constant 0 : index
    %118 = vector.load %arg3[%c5_41, %c0_42, %c0_43] : memref<9x1x512xf32, #tpu.memory_space<vmem>>, vector<1x1x512xf32>
    %119 = vector.shape_cast %118 : vector<1x1x512xf32> to vector<1x512xf32>
    %120 = vector.broadcast %119 : vector<1x512xf32> to vector<8x512xf32>
    %121 = arith.mulf %117, %120 : vector<8x512xf32>
    %122 = arith.truncf %121 : vector<8x512xf32> to vector<8x512xbf16>
    %123 = vector.extract_strided_slice %76 {offsets = [0, 15], sizes = [8, 497], strides = [1, 1]} : vector<8x512xf32> to vector<8x497xf32>
    %124 = vector.extract_strided_slice %76 {offsets = [0, 0], sizes = [8, 15], strides = [1, 1]} : vector<8x512xf32> to vector<8x15xf32>
    %125 = tpu.concatenate %123, %124 in 1 : vector<8x497xf32>, vector<8x15xf32> -> vector<8x512xf32>
    %c6_44 = arith.constant 6 : index
    %c0_45 = arith.constant 0 : index
    %c0_46 = arith.constant 0 : index
    %126 = vector.load %arg3[%c6_44, %c0_45, %c0_46] : memref<9x1x512xf32, #tpu.memory_space<vmem>>, vector<1x1x512xf32>
    %127 = vector.shape_cast %126 : vector<1x1x512xf32> to vector<1x512xf32>
    %128 = vector.broadcast %127 : vector<1x512xf32> to vector<8x512xf32>
    %129 = arith.mulf %125, %128 : vector<8x512xf32>
    %130 = arith.truncf %129 : vector<8x512xf32> to vector<8x512xbf16>
    %131 = vector.extract_strided_slice %76 {offsets = [0, 16], sizes = [8, 496], strides = [1, 1]} : vector<8x512xf32> to vector<8x496xf32>
    %132 = vector.extract_strided_slice %76 {offsets = [0, 0], sizes = [8, 16], strides = [1, 1]} : vector<8x512xf32> to vector<8x16xf32>
    %133 = tpu.concatenate %131, %132 in 1 : vector<8x496xf32>, vector<8x16xf32> -> vector<8x512xf32>
    %c7_47 = arith.constant 7 : index
    %c0_48 = arith.constant 0 : index
    %c0_49 = arith.constant 0 : index
    %134 = vector.load %arg3[%c7_47, %c0_48, %c0_49] : memref<9x1x512xf32, #tpu.memory_space<vmem>>, vector<1x1x512xf32>
    %135 = vector.shape_cast %134 : vector<1x1x512xf32> to vector<1x512xf32>
    %136 = vector.broadcast %135 : vector<1x512xf32> to vector<8x512xf32>
    %137 = arith.mulf %133, %136 : vector<8x512xf32>
    %138 = arith.truncf %137 : vector<8x512xf32> to vector<8x512xbf16>
    %139 = vector.extract_strided_slice %76 {offsets = [0, 17], sizes = [8, 495], strides = [1, 1]} : vector<8x512xf32> to vector<8x495xf32>
    %140 = vector.extract_strided_slice %76 {offsets = [0, 0], sizes = [8, 17], strides = [1, 1]} : vector<8x512xf32> to vector<8x17xf32>
    %141 = tpu.concatenate %139, %140 in 1 : vector<8x495xf32>, vector<8x17xf32> -> vector<8x512xf32>
    %c8_50 = arith.constant 8 : index
    %c0_51 = arith.constant 0 : index
    %c0_52 = arith.constant 0 : index
    %142 = vector.load %arg3[%c8_50, %c0_51, %c0_52] : memref<9x1x512xf32, #tpu.memory_space<vmem>>, vector<1x1x512xf32>
    %143 = vector.shape_cast %142 : vector<1x1x512xf32> to vector<1x512xf32>
    %144 = vector.broadcast %143 : vector<1x512xf32> to vector<8x512xf32>
    %145 = arith.mulf %141, %144 : vector<8x512xf32>
    %146 = arith.truncf %145 : vector<8x512xf32> to vector<8x512xbf16>
    %147 = tpu.concatenate %85, %93, %101, %109, %114, %122, %130, %138, %146 in 0 : vector<8x512xbf16>, vector<8x512xbf16>, vector<8x512xbf16>, vector<8x512xbf16>, vector<8x512xbf16>, vector<8x512xbf16>, vector<8x512xbf16>, vector<8x512xbf16>, vector<8x512xbf16> -> vector<72x512xbf16>
    %cst_53 = arith.constant dense<0.000000e+00> : vector<8x512xf32>
    %148 = tpu.matmul %77, %147, %cst_53 {dimension_numbers = #tpu.dot_dimension_numbers<[1], [0], [0], [1], [0, 0, 1, 1], [], []>} : vector<8x72xbf16>, vector<72x512xbf16>, vector<8x512xf32> -> vector<8x512xf32>
    %c0_54 = arith.constant 0 : index
    %c0_55 = arith.constant 0 : index
    %149 = vector.load %arg7[%c0_54, %c0_55] : memref<8x1xf32, #tpu.memory_space<vmem>>, vector<8x1xf32>
    %150 = vector.broadcast %149 : vector<8x1xf32> to vector<8x512xf32>
    %151 = arith.addf %148, %150 : vector<8x512xf32>
    %c0_56 = arith.constant 0 : index
    %c0_57 = arith.constant 0 : index
    %152 = vector.load %arg2[%c0_56, %c0_57] : memref<1x512xf32, #tpu.memory_space<vmem>>, vector<1x512xf32>
    %153 = vector.broadcast %152 : vector<1x512xf32> to vector<8x512xf32>
    %154 = arith.mulf %151, %153 : vector<8x512xf32>
    %155 = math.tanh %154 : vector<8x512xf32>
    %156 = vector.extract_strided_slice %155 {offsets = [0, 1], sizes = [8, 511], strides = [1, 1]} : vector<8x512xf32> to vector<8x511xf32>
    %157 = vector.extract_strided_slice %155 {offsets = [0, 0], sizes = [8, 1], strides = [1, 1]} : vector<8x512xf32> to vector<8x1xf32>
    %158 = tpu.concatenate %156, %157 in 1 : vector<8x511xf32>, vector<8x1xf32> -> vector<8x512xf32>
    %159 = arith.addf %155, %158 : vector<8x512xf32>
    %160 = vector.extract_strided_slice %155 {offsets = [0, 16], sizes = [8, 496], strides = [1, 1]} : vector<8x512xf32> to vector<8x496xf32>
    %161 = vector.extract_strided_slice %155 {offsets = [0, 0], sizes = [8, 16], strides = [1, 1]} : vector<8x512xf32> to vector<8x16xf32>
    %162 = tpu.concatenate %160, %161 in 1 : vector<8x496xf32>, vector<8x16xf32> -> vector<8x512xf32>
    %163 = arith.addf %159, %162 : vector<8x512xf32>
    %164 = vector.extract_strided_slice %155 {offsets = [0, 17], sizes = [8, 495], strides = [1, 1]} : vector<8x512xf32> to vector<8x495xf32>
    %165 = vector.extract_strided_slice %155 {offsets = [0, 0], sizes = [8, 17], strides = [1, 1]} : vector<8x512xf32> to vector<8x17xf32>
    %166 = tpu.concatenate %164, %165 in 1 : vector<8x495xf32>, vector<8x17xf32> -> vector<8x512xf32>
    %167 = arith.addf %163, %166 : vector<8x512xf32>
    %cst_58 = arith.constant 2.500000e-01 : f32
    %168 = vector.broadcast %cst_58 : f32 to vector<8x512xf32>
    %169 = arith.mulf %167, %168 : vector<8x512xf32>
    %170 = tpu.transpose %169, [1, 0] : vector<8x512xf32> -> vector<512x8xf32>
    %c0_59 = arith.constant 0 : index
    %c0_60 = arith.constant 0 : index
    %171 = vector.load %arg9[%c0_59, %c0_60] : memref<512x8xf32, #tpu.memory_space<vmem>>, vector<512x8xf32>
    tpu.vector_store %arg9[%c0_59, %c0_60], %170 {strides = array<i32>} : memref<512x8xf32, #tpu.memory_space<vmem>>, vector<512x8xf32>,
    %c0_61 = arith.constant 0 : index
    %c0_62 = arith.constant 0 : index
    %172 = tpu.strided_load %arg9[%c0_61, %c0_62] {strides = array<i32: 2, 1>} : memref<512x8xf32, #tpu.memory_space<vmem>>, vector<8x8xf32>
    %c32 = arith.constant 32 : index
    %c0_63 = arith.constant 0 : index
    %173 = tpu.strided_load %arg9[%c32, %c0_63] {strides = array<i32: 2, 1>} : memref<512x8xf32, #tpu.memory_space<vmem>>, vector<8x8xf32>
    %c64 = arith.constant 64 : index
    %c0_64 = arith.constant 0 : index
    %174 = tpu.strided_load %arg9[%c64, %c0_64] {strides = array<i32: 2, 1>} : memref<512x8xf32, #tpu.memory_space<vmem>>, vector<8x8xf32>
    %c96 = arith.constant 96 : index
    %c0_65 = arith.constant 0 : index
    %175 = tpu.strided_load %arg9[%c96, %c0_65] {strides = array<i32: 2, 1>} : memref<512x8xf32, #tpu.memory_space<vmem>>, vector<8x8xf32>
    %c128 = arith.constant 128 : index
    %c0_66 = arith.constant 0 : index
    %176 = tpu.strided_load %arg9[%c128, %c0_66] {strides = array<i32: 2, 1>} : memref<512x8xf32, #tpu.memory_space<vmem>>, vector<8x8xf32>
    %c160 = arith.constant 160 : index
    %c0_67 = arith.constant 0 : index
    %177 = tpu.strided_load %arg9[%c160, %c0_67] {strides = array<i32: 2, 1>} : memref<512x8xf32, #tpu.memory_space<vmem>>, vector<8x8xf32>
    %c192 = arith.constant 192 : index
    %c0_68 = arith.constant 0 : index
    %178 = tpu.strided_load %arg9[%c192, %c0_68] {strides = array<i32: 2, 1>} : memref<512x8xf32, #tpu.memory_space<vmem>>, vector<8x8xf32>
    %c224 = arith.constant 224 : index
    %c0_69 = arith.constant 0 : index
    %179 = tpu.strided_load %arg9[%c224, %c0_69] {strides = array<i32: 2, 1>} : memref<512x8xf32, #tpu.memory_space<vmem>>, vector<8x8xf32>
    %c256 = arith.constant 256 : index
    %c0_70 = arith.constant 0 : index
    %180 = tpu.strided_load %arg9[%c256, %c0_70] {strides = array<i32: 2, 1>} : memref<512x8xf32, #tpu.memory_space<vmem>>, vector<8x8xf32>
    %c288 = arith.constant 288 : index
    %c0_71 = arith.constant 0 : index
    %181 = tpu.strided_load %arg9[%c288, %c0_71] {strides = array<i32: 2, 1>} : memref<512x8xf32, #tpu.memory_space<vmem>>, vector<8x8xf32>
    %c320 = arith.constant 320 : index
    %c0_72 = arith.constant 0 : index
    %182 = tpu.strided_load %arg9[%c320, %c0_72] {strides = array<i32: 2, 1>} : memref<512x8xf32, #tpu.memory_space<vmem>>, vector<8x8xf32>
    %c352 = arith.constant 352 : index
    %c0_73 = arith.constant 0 : index
    %183 = tpu.strided_load %arg9[%c352, %c0_73] {strides = array<i32: 2, 1>} : memref<512x8xf32, #tpu.memory_space<vmem>>, vector<8x8xf32>
    %c384 = arith.constant 384 : index
    %c0_74 = arith.constant 0 : index
    %184 = tpu.strided_load %arg9[%c384, %c0_74] {strides = array<i32: 2, 1>} : memref<512x8xf32, #tpu.memory_space<vmem>>, vector<8x8xf32>
    %c416 = arith.constant 416 : index
    %c0_75 = arith.constant 0 : index
    %185 = tpu.strided_load %arg9[%c416, %c0_75] {strides = array<i32: 2, 1>} : memref<512x8xf32, #tpu.memory_space<vmem>>, vector<8x8xf32>
    %c448 = arith.constant 448 : index
    %c0_76 = arith.constant 0 : index
    %186 = tpu.strided_load %arg9[%c448, %c0_76] {strides = array<i32: 2, 1>} : memref<512x8xf32, #tpu.memory_space<vmem>>, vector<8x8xf32>
    %c480 = arith.constant 480 : index
    %c0_77 = arith.constant 0 : index
    %187 = tpu.strided_load %arg9[%c480, %c0_77] {strides = array<i32: 2, 1>} : memref<512x8xf32, #tpu.memory_space<vmem>>, vector<8x8xf32>
    %188 = tpu.concatenate %172, %173, %174, %175, %176, %177, %178, %179, %180, %181, %182, %183, %184, %185, %186, %187 in 0 : vector<8x8xf32>, vector<8x8xf32>, vector<8x8xf32>, vector<8x8xf32>, vector<8x8xf32>, vector<8x8xf32>, vector<8x8xf32>, vector<8x8xf32>, vector<8x8xf32>, vector<8x8xf32>, vector<8x8xf32>, vector<8x8xf32>, vector<8x8xf32>, vector<8x8xf32>, vector<8x8xf32>, vector<8x8xf32> -> vector<128x8xf32>
    %189 = tpu.transpose %188, [1, 0] : vector<128x8xf32> -> vector<8x128xf32>
    %c0_78 = arith.constant 0 : index
    %c0_79 = arith.constant 0 : index
    %190 = vector.load %arg8[%c0_78, %c0_79] : memref<8x128xf32, #tpu.memory_space<vmem>>, vector<8x128xf32>
    tpu.vector_store %arg8[%c0_78, %c0_79], %189 {strides = array<i32>} : memref<8x128xf32, #tpu.memory_space<vmem>>, vector<8x128xf32>,
    return
  }
  func.func @transform_0(%arg0: i32) -> (i32, i32) {
    %c0_i32 = arith.constant 0 : i32
    %c0_i32_0 = arith.constant 0 : i32
    return %c0_i32, %arg0 : i32, i32
  }
  func.func @transform_1(%arg0: i32) -> (i32, i32) {
    %c0_i32 = arith.constant 0 : i32
    %c0_i32_0 = arith.constant 0 : i32
    return %c0_i32, %arg0 : i32, i32
  }
  func.func @transform_2(%arg0: i32) -> (i32, i32, i32) {
    %c0_i32 = arith.constant 0 : i32
    %c0_i32_0 = arith.constant 0 : i32
    %c0_i32_1 = arith.constant 0 : i32
    %c0_i32_2 = arith.constant 0 : i32
    return %c0_i32, %c0_i32_0, %c0_i32_1 : i32, i32, i32
  }
  func.func @transform_3(%arg0: i32) -> (i32, i32) {
    %c0_i32 = arith.constant 0 : i32
    %c0_i32_0 = arith.constant 0 : i32
    %c0_i32_1 = arith.constant 0 : i32
    return %c0_i32, %c0_i32_0 : i32, i32
  }
  func.func @transform_4(%arg0: i32) -> (i32, i32) {
    %c0_i32 = arith.constant 0 : i32
    %c0_i32_0 = arith.constant 0 : i32
    %c0_i32_1 = arith.constant 0 : i32
    return %c0_i32, %c0_i32_0 : i32, i32
  }
  func.func @transform_5(%arg0: i32) -> (i32, i32) {
    %c0_i32 = arith.constant 0 : i32
    %c0_i32_0 = arith.constant 0 : i32
    %c0_i32_1 = arith.constant 0 : i32
    return %c0_i32, %c0_i32_0 : i32, i32
  }
  func.func @transform_6(%arg0: i32) -> (i32, i32) {
    %c0_i32 = arith.constant 0 : i32
    %c0_i32_0 = arith.constant 0 : i32
    %c0_i32_1 = arith.constant 0 : i32
    return %c0_i32, %c0_i32_0 : i32, i32
  }
  func.func @transform_7(%arg0: i32) -> (i32, i32) {
    %c0_i32 = arith.constant 0 : i32
    %c0_i32_0 = arith.constant 0 : i32
    return %c0_i32, %arg0 : i32, i32
  }
}

</mosaic_0001>

<llo_original>
// kernel: tpu_custom_call.1
$region0: #{tpu_custom_call.1}
  #allocation0 [shape = 'u32[]', space=smem, size = 0x4, offset = 0x4, fixed_abs, tag = 'smem constant byte address 0x4 - core index']
  #allocation1 [shape = 'u32[144,128]{1,0:T(1,128)}', space=vmem, size = 0x12000, scoped, tag = 'internal scratch']
  #allocation2 [shape = 'f32[512,8]{1,0:T(8,128)}', space=vmem, size = 0x40000, scoped, tag = 'scratch operand']
  %s0 = inlined_call_operand.vmem [shape: f32[4,512], index: 0, kind: input, shape index: {}]
  %s1 = inlined_call_operand.vmem [shape: f32[1,512], index: 1, kind: input, shape index: {}]
  %s2 = inlined_call_operand.hbm [shape: f32[9,1,512], index: 2, kind: input, shape index: {}]
  %s3 = inlined_call_operand.vmem [shape: bf16[8,36], index: 3, kind: input, shape index: {}]
  %s4 = inlined_call_operand.vmem [shape: f32[8,1], index: 4, kind: input, shape index: {}]
  %s5 = inlined_call_operand.vmem [shape: bf16[8,72], index: 5, kind: input, shape index: {}]
  %s6 = inlined_call_operand.vmem [shape: f32[8,1], index: 6, kind: input, shape index: {}]
  %s7 = inlined_call_operand.hbm [shape: f32[8,128], index: 7, kind: output, shape index: {}]
  %s8 = sld [smem:[#allocation0]]
  $region42: #{tpu_custom_call.1} parent=0
    _
  %s10 = ssub.s32 1, %s8
  %s11 = scalar_select 0, %s10, %s8
  $region1: #{tpu_custom_call.1} parent=0
    #allocation3 [shape = 'u8[18432]{0}', space=vmem, size = 0x4800, scoped, tag = 'input window, operand 2, single buffered']
    #allocation4 [shape = 's32[1]{0}', space=sflag, size = 0x4, scoped, tag = 'scoped memory for tpu_custom_call.1']
    #allocation5 [shape = 's32[1]{0}', space=sflag, size = 0x4, scoped, tag = 'scoped memory for tpu_custom_call.1']
    #allocation6 [shape = 'u8[4096]{0}', space=vmem, size = 0x1000, scoped, tag = 'output window, operand 0, single buffered']
    %12 = vsyncpa [#allocation4], 0
    %13 = vsyncpa [#allocation5], 0
    // Predicated region
    $region2: #{tpu_custom_call.1} parent=1 // pred_check
      _
    $region3: #{tpu_custom_call.1} parent=1 // pred_check_branch
      %15 = sbr.rel (0) target = $region5
    $region4: #{tpu_custom_call.1} parent=1 // pred_region
      _
    $region5: #{tpu_custom_call.1} parent=1 // pred_fallthru
      _
    // Predicated region
    $region6: #{tpu_custom_call.1} parent=1 // pred_check
      _
    $region7: #{tpu_custom_call.1} parent=1 // pred_check_branch
      %17 = sbr.rel (0) target = $region9
    $region8: #{tpu_custom_call.1} parent=1 // pred_region
      _
    $region9: #{tpu_custom_call.1} parent=1 // pred_fallthru
      _
    // Predicated region
    $region10: #{tpu_custom_call.1} parent=1 // pred_check
      _
    $region11: #{tpu_custom_call.1} parent=1 // pred_check_branch
      %19 = sbr.rel (0) target = $region13
    $region12: #{tpu_custom_call.1} parent=1 // pred_region
      %s21 = ssub.s32 576, 576
      %22 = vsyncadd [#allocation4], %s21
      %s23 = sshll.u32 [#allocation3], 4
      %s24 = int_to_ptr.vmem [resolvable:$true] %s23
      %29 = dma.hbm_to_vmem [thread:$0]  %s2, 576, %s24, [#allocation4], 64, 64, 4
    $region13: #{tpu_custom_call.1} parent=1 // pred_fallthru
      _
    // Predicated region
    $region14: #{tpu_custom_call.1} parent=1 // pred_check
      _
    $region15: #{tpu_custom_call.1} parent=1 // pred_check_branch
      %31 = sbr.rel (0) target = $region17
    $region16: #{tpu_custom_call.1} parent=1 // pred_region
      _
    $region17: #{tpu_custom_call.1} parent=1 // pred_fallthru
      _
    // Predicated region
    $region18: #{tpu_custom_call.1} parent=1 // pred_check
      _
    $region19: #{tpu_custom_call.1} parent=1 // pred_check_branch
      %33 = sbr.rel (0) target = $region21
    $region20: #{tpu_custom_call.1} parent=1 // pred_region
      _
    $region21: #{tpu_custom_call.1} parent=1 // pred_fallthru
      _
    // Predicated region
    $region22: #{tpu_custom_call.1} parent=1 // pred_check
      _
    $region23: #{tpu_custom_call.1} parent=1 // pred_check_branch
      %35 = sbr.rel (0) target = $region25
    $region24: #{tpu_custom_call.1} parent=1 // pred_region
      _
    $region25: #{tpu_custom_call.1} parent=1 // pred_fallthru
      _
    // Predicated region
    $region26: #{tpu_custom_call.1} parent=1 // pred_check
      _
    $region27: #{tpu_custom_call.1} parent=1 // pred_check_branch
      %37 = sbr.rel (0) target = $region29
    $region28: #{tpu_custom_call.1} parent=1 // pred_region
      _
    $region29: #{tpu_custom_call.1} parent=1 // pred_fallthru
      _
    // Predicated region
    $region30: #{tpu_custom_call.1} parent=1 // pred_check
      _
    $region31: #{tpu_custom_call.1} parent=1 // pred_check_branch
      %39 = sbr.rel (0) target = $region33
    $region32: #{tpu_custom_call.1} parent=1 // pred_region
      %40 = dma.done [#allocation4], 576
    $region33: #{tpu_custom_call.1} parent=1 // pred_fallthru
      _
    %v42 = vld [vmem:[%s3] sm:$0xf]
    %v43 = vld [vmem:[%s0] sm:$0xff]
    %v44 = vld [vmem:[%s0 + $0x8] sm:$0xff]
    %v46 = vcombine.high %v44, %v44
    %47 = vrot.lane.b32.xlu0 %v46, 17
    %v48 = vpop.permute.xlu0 %47
    %v51 = vcombine.high %v43, %v43
    %52 = vrot.lane.b32.xlu0 %v43, 17
    %v53 = vpop.permute.xlu0 %52
    %54 = vrot.lane.b32.xlu0 %v51, 17
    %v55 = vpop.permute.xlu0 %54
    %56 = vrot.lane.b32.xlu0 %v44, 17
    %v57 = vpop.permute.xlu0 %56
    %vm58 = vcmask 138240
    %v59 = vsel %vm58, %v53, %v55
    %v60 = vsel %vm58, %v55, %v57
    %v61 = vsel %vm58, %v57, %v48
    %v66 = vsel %vm58, %v48, %v53
    %v67 = vld [vmem:[#allocation3] sm:$0xf]
    %v69 = vlaneseq
    %v70 = vshrl.u32 %v69, 7
    %v71 = vsub.s32 0, %v70
    %v72 = vrot.slane %v67, %v71
    %v73 = vlaneseq
    %v74 = vshrl.u32 %v73, 7
    %v75 = vsub.s32 1, %v74
    %v76 = vrot.slane %v67, %v75
    %v77 = vlaneseq
    %v78 = vshrl.u32 %v77, 7
    %v79 = vsub.s32 2, %v78
    %v80 = vrot.slane %v67, %v79
    %v81 = vlaneseq
    %v82 = vshrl.u32 %v81, 7
    %v83 = vsub.s32 3, %v82
    %v84 = vrot.slane %v67, %v83
    %v89 = vmul.f32 %v66, %v72
    %v90 = vmul.f32 %v59, %v76
    %v91 = vmul.f32 %v60, %v80
    %v92 = vmul.f32 %v61, %v84
    %v93 = vpack.c.bf16 %v89, %v89
    %v94 = vpack.c.bf16 %v90, %v90
    %v95 = vpack.c.bf16 %v91, %v91
    %v96 = vpack.c.bf16 %v92, %v92
    %97 = vrot.lane.b32.xlu0 %v46, 16
    %v98 = vpop.permute.xlu0 %97
    %100 = vrot.lane.b32.xlu0 %v43, 16
    %v101 = vpop.permute.xlu0 %100
    %102 = vrot.lane.b32.xlu0 %v51, 16
    %v103 = vpop.permute.xlu0 %102
    %104 = vrot.lane.b32.xlu0 %v44, 16
    %v105 = vpop.permute.xlu0 %104
    %vm106 = vcmask 130048
    %v107 = vsel %vm106, %v101, %v103
    %v108 = vsel %vm106, %v103, %v105
    %v109 = vsel %vm106, %v105, %v98
    %v114 = vsel %vm106, %v98, %v101
    %s115 = scalar_lea.vmem [#allocation3], 4
    %v116 = vld [vmem:[%s115] sm:$0xf]
    %v118 = vlaneseq
    %v119 = vshrl.u32 %v118, 7
    %v120 = vsub.s32 0, %v119
    %v121 = vrot.slane %v116, %v120
    %v122 = vlaneseq
    %v123 = vshrl.u32 %v122, 7
    %v124 = vsub.s32 1, %v123
    %v125 = vrot.slane %v116, %v124
    %v126 = vlaneseq
    %v127 = vshrl.u32 %v126, 7
    %v128 = vsub.s32 2, %v127
    %v129 = vrot.slane %v116, %v128
    %v130 = vlaneseq
    %v131 = vshrl.u32 %v130, 7
    %v132 = vsub.s32 3, %v131
    %v133 = vrot.slane %v116, %v132
    %v138 = vmul.f32 %v114, %v121
    %v139 = vmul.f32 %v107, %v125
    %v140 = vmul.f32 %v108, %v129
    %v141 = vmul.f32 %v109, %v133
    %v142 = vpack.c.bf16 %v138, %v138
    %v143 = vpack.c.bf16 %v139, %v139
    %v144 = vpack.c.bf16 %v140, %v140
    %v145 = vpack.c.bf16 %v141, %v141
    %146 = vrot.lane.b32.xlu0 %v46, 15
    %v147 = vpop.permute.xlu0 %146
    %149 = vrot.lane.b32.xlu0 %v43, 15
    %v150 = vpop.permute.xlu0 %149
    %151 = vrot.lane.b32.xlu0 %v51, 15
    %v152 = vpop.permute.xlu0 %151
    %153 = vrot.lane.b32.xlu0 %v44, 15
    %v154 = vpop.permute.xlu0 %153
    %vm155 = vcmask 121856
    %v156 = vsel %vm155, %v150, %v152
    %v157 = vsel %vm155, %v152, %v154
    %v158 = vsel %vm155, %v154, %v147
    %v163 = vsel %vm155, %v147, %v150
    %s164 = scalar_lea.vmem [#allocation3], 8
    %v165 = vld [vmem:[%s164] sm:$0xf]
    %v167 = vlaneseq
    %v168 = vshrl.u32 %v167, 7
    %v169 = vsub.s32 0, %v168
    %v170 = vrot.slane %v165, %v169
    %v171 = vlaneseq
    %v172 = vshrl.u32 %v171, 7
    %v173 = vsub.s32 1, %v172
    %v174 = vrot.slane %v165, %v173
    %v175 = vlaneseq
    %v176 = vshrl.u32 %v175, 7
    %v177 = vsub.s32 2, %v176
    %v178 = vrot.slane %v165, %v177
    %v179 = vlaneseq
    %v180 = vshrl.u32 %v179, 7
    %v181 = vsub.s32 3, %v180
    %v182 = vrot.slane %v165, %v181
    %v187 = vmul.f32 %v163, %v170
    %v188 = vmul.f32 %v156, %v174
    %v189 = vmul.f32 %v157, %v178
    %v190 = vmul.f32 %v158, %v182
    %v191 = vpack.c.bf16 %v187, %v187
    %v192 = vpack.c.bf16 %v188, %v188
    %v193 = vpack.c.bf16 %v189, %v189
    %v194 = vpack.c.bf16 %v190, %v190
    %195 = vrot.lane.b32.xlu0 %v46, 1
    %v196 = vpop.permute.xlu0 %195
    %198 = vrot.lane.b32.xlu0 %v43, 1
    %v199 = vpop.permute.xlu0 %198
    %200 = vrot.lane.b32.xlu0 %v51, 1
    %v201 = vpop.permute.xlu0 %200
    %202 = vrot.lane.b32.xlu0 %v44, 1
    %v203 = vpop.permute.xlu0 %202
    %vm204 = vcmask 7168
    %v205 = vsel %vm204, %v199, %v201
    %v206 = vsel %vm204, %v201, %v203
    %v207 = vsel %vm204, %v203, %v196
    %v212 = vsel %vm204, %v196, %v199
    %s213 = scalar_lea.vmem [#allocation3], 12
    %v214 = vld [vmem:[%s213] sm:$0xf]
    %v216 = vlaneseq
    %v217 = vshrl.u32 %v216, 7
    %v218 = vsub.s32 0, %v217
    %v219 = vrot.slane %v214, %v218
    %v220 = vlaneseq
    %v221 = vshrl.u32 %v220, 7
    %v222 = vsub.s32 1, %v221
    %v223 = vrot.slane %v214, %v222
    %v224 = vlaneseq
    %v225 = vshrl.u32 %v224, 7
    %v226 = vsub.s32 2, %v225
    %v227 = vrot.slane %v214, %v226
    %v228 = vlaneseq
    %v229 = vshrl.u32 %v228, 7
    %v230 = vsub.s32 3, %v229
    %v231 = vrot.slane %v214, %v230
    %v236 = vmul.f32 %v212, %v219
    %v237 = vmul.f32 %v205, %v223
    %v238 = vmul.f32 %v206, %v227
    %v239 = vmul.f32 %v207, %v231
    %v240 = vpack.c.bf16 %v236, %v236
    %v241 = vpack.c.bf16 %v237, %v237
    %v242 = vpack.c.bf16 %v238, %v238
    %v243 = vpack.c.bf16 %v239, %v239
    %s244 = scalar_lea.vmem [#allocation3], 16
    %v245 = vld [vmem:[%s244] sm:$0xf]
    %v247 = vlaneseq
    %v248 = vshrl.u32 %v247, 7
    %v249 = vsub.s32 0, %v248
    %v250 = vrot.slane %v245, %v249
    %v251 = vlaneseq
    %v252 = vshrl.u32 %v251, 7
    %v253 = vsub.s32 1, %v252
    %v254 = vrot.slane %v245, %v253
    %v255 = vlaneseq
    %v256 = vshrl.u32 %v255, 7
    %v257 = vsub.s32 2, %v256
    %v258 = vrot.slane %v245, %v257
    %v259 = vlaneseq
    %v260 = vshrl.u32 %v259, 7
    %v261 = vsub.s32 3, %v260
    %v262 = vrot.slane %v245, %v261
    %v263 = vcombine.low %v250, %v254
    %v264 = vcombine.low %v258, %v262
    %v267 = vmul.f32 %v43, %v263
    %v268 = vmul.f32 %v44, %v264
    %v271 = vcombine.high %v267, %v267
    %v272 = vcombine.high %v268, %v268
    %v275 = vpack.c.bf16 %v267, %v267
    %v276 = vpack.c.bf16 %v271, %v271
    %v277 = vpack.c.bf16 %v268, %v268
    %v278 = vpack.c.bf16 %v272, %v272
    %279 = vrot.lane.b32.xlu0 %v43, 127
    %v280 = vpop.permute.xlu0 %279
    %281 = vrot.lane.b32.xlu0 %v51, 127
    %v282 = vpop.permute.xlu0 %281
    %283 = vrot.lane.b32.xlu0 %v44, 127
    %v284 = vpop.permute.xlu0 %283
    %285 = vrot.lane.b32.xlu0 %v46, 127
    %v286 = vpop.permute.xlu0 %285
    %vm287 = vcmask 1039360
    %v288 = vsel %vm287, %v280, %v282
    %v289 = vsel %vm287, %v282, %v284
    %v290 = vsel %vm287, %v284, %v286
    %v296 = vsel %vm287, %v286, %v280
    %s297 = scalar_lea.vmem [#allocation3], 20
    %v298 = vld [vmem:[%s297] sm:$0xf]
    %v300 = vlaneseq
    %v301 = vshrl.u32 %v300, 7
    %v302 = vsub.s32 0, %v301
    %v303 = vrot.slane %v298, %v302
    %v304 = vlaneseq
    %v305 = vshrl.u32 %v304, 7
    %v306 = vsub.s32 1, %v305
    %v307 = vrot.slane %v298, %v306
    %v308 = vlaneseq
    %v309 = vshrl.u32 %v308, 7
    %v310 = vsub.s32 2, %v309
    %v311 = vrot.slane %v298, %v310
    %v312 = vlaneseq
    %v313 = vshrl.u32 %v312, 7
    %v314 = vsub.s32 3, %v313
    %v315 = vrot.slane %v298, %v314
    %v320 = vmul.f32 %v288, %v303
    %v321 = vmul.f32 %v289, %v307
    %v322 = vmul.f32 %v290, %v311
    %v323 = vmul.f32 %v296, %v315
    %v324 = vpack.c.bf16 %v320, %v320
    %v325 = vpack.c.bf16 %v321, %v321
    %v326 = vpack.c.bf16 %v322, %v322
    %v327 = vpack.c.bf16 %v323, %v323
    %328 = vrot.lane.b32.xlu0 %v43, 113
    %v329 = vpop.permute.xlu0 %328
    %330 = vrot.lane.b32.xlu0 %v51, 113
    %v331 = vpop.permute.xlu0 %330
    %332 = vrot.lane.b32.xlu0 %v44, 113
    %v333 = vpop.permute.xlu0 %332
    %334 = vrot.lane.b32.xlu0 %v46, 113
    %v335 = vpop.permute.xlu0 %334
    %vm336 = vcmask 924672
    %v337 = vsel %vm336, %v329, %v331
    %v338 = vsel %vm336, %v331, %v333
    %v339 = vsel %vm336, %v333, %v335
    %v345 = vsel %vm336, %v335, %v329
    %s346 = scalar_lea.vmem [#allocation3], 24
    %v347 = vld [vmem:[%s346] sm:$0xf]
    %v349 = vlaneseq
    %v350 = vshrl.u32 %v349, 7
    %v351 = vsub.s32 0, %v350
    %v352 = vrot.slane %v347, %v351
    %v353 = vlaneseq
    %v354 = vshrl.u32 %v353, 7
    %v355 = vsub.s32 1, %v354
    %v356 = vrot.slane %v347, %v355
    %v357 = vlaneseq
    %v358 = vshrl.u32 %v357, 7
    %v359 = vsub.s32 2, %v358
    %v360 = vrot.slane %v347, %v359
    %v361 = vlaneseq
    %v362 = vshrl.u32 %v361, 7
    %v363 = vsub.s32 3, %v362
    %v364 = vrot.slane %v347, %v363
    %v369 = vmul.f32 %v337, %v352
    %v370 = vmul.f32 %v338, %v356
    %v371 = vmul.f32 %v339, %v360
    %v372 = vmul.f32 %v345, %v364
    %v373 = vpack.c.bf16 %v369, %v369
    %v374 = vpack.c.bf16 %v370, %v370
    %v375 = vpack.c.bf16 %v371, %v371
    %v376 = vpack.c.bf16 %v372, %v372
    %377 = vrot.lane.b32.xlu0 %v43, 112
    %v378 = vpop.permute.xlu0 %377
    %379 = vrot.lane.b32.xlu0 %v51, 112
    %v380 = vpop.permute.xlu0 %379
    %381 = vrot.lane.b32.xlu0 %v44, 112
    %v382 = vpop.permute.xlu0 %381
    %383 = vrot.lane.b32.xlu0 %v46, 112
    %v384 = vpop.permute.xlu0 %383
    %vm385 = vcmask 916480
    %v386 = vsel %vm385, %v378, %v380
    %v387 = vsel %vm385, %v380, %v382
    %v388 = vsel %vm385, %v382, %v384
    %v394 = vsel %vm385, %v384, %v378
    %s395 = scalar_lea.vmem [#allocation3], 28
    %v396 = vld [vmem:[%s395] sm:$0xf]
    %v398 = vlaneseq
    %v399 = vshrl.u32 %v398, 7
    %v400 = vsub.s32 0, %v399
    %v401 = vrot.slane %v396, %v400
    %v402 = vlaneseq
    %v403 = vshrl.u32 %v402, 7
    %v404 = vsub.s32 1, %v403
    %v405 = vrot.slane %v396, %v404
    %v406 = vlaneseq
    %v407 = vshrl.u32 %v406, 7
    %v408 = vsub.s32 2, %v407
    %v409 = vrot.slane %v396, %v408
    %v410 = vlaneseq
    %v411 = vshrl.u32 %v410, 7
    %v412 = vsub.s32 3, %v411
    %v413 = vrot.slane %v396, %v412
    %v418 = vmul.f32 %v386, %v401
    %v419 = vmul.f32 %v387, %v405
    %v420 = vmul.f32 %v388, %v409
    %v421 = vmul.f32 %v394, %v413
    %v422 = vpack.c.bf16 %v418, %v418
    %v423 = vpack.c.bf16 %v419, %v419
    %v424 = vpack.c.bf16 %v420, %v420
    %v425 = vpack.c.bf16 %v421, %v421
    %426 = vrot.lane.b32.xlu0 %v43, 111
    %v427 = vpop.permute.xlu0 %426
    %428 = vrot.lane.b32.xlu0 %v51, 111
    %v429 = vpop.permute.xlu0 %428
    %430 = vrot.lane.b32.xlu0 %v44, 111
    %v431 = vpop.permute.xlu0 %430
    %432 = vrot.lane.b32.xlu0 %v46, 111
    %v433 = vpop.permute.xlu0 %432
    %vm434 = vcmask 908288
    %v435 = vsel %vm434, %v427, %v429
    %v436 = vsel %vm434, %v429, %v431
    %v437 = vsel %vm434, %v431, %v433
    %v443 = vsel %vm434, %v433, %v427
    %s444 = scalar_lea.vmem [#allocation3], 32
    %v445 = vld [vmem:[%s444] sm:$0xf]
    %v447 = vlaneseq
    %v448 = vshrl.u32 %v447, 7
    %v449 = vsub.s32 0, %v448
    %v450 = vrot.slane %v445, %v449
    %v451 = vlaneseq
    %v452 = vshrl.u32 %v451, 7
    %v453 = vsub.s32 1, %v452
    %v454 = vrot.slane %v445, %v453
    %v455 = vlaneseq
    %v456 = vshrl.u32 %v455, 7
    %v457 = vsub.s32 2, %v456
    %v458 = vrot.slane %v445, %v457
    %v459 = vlaneseq
    %v460 = vshrl.u32 %v459, 7
    %v461 = vsub.s32 3, %v460
    %v462 = vrot.slane %v445, %v461
    %v467 = vmul.f32 %v435, %v450
    %v468 = vmul.f32 %v436, %v454
    %v469 = vmul.f32 %v437, %v458
    %v470 = vmul.f32 %v443, %v462
    %v471 = vpack.c.bf16 %v467, %v467
    %v472 = vpack.c.bf16 %v468, %v468
    %v473 = vpack.c.bf16 %v469, %v469
    %v474 = vpack.c.bf16 %v470, %v470
    %v479 = vrot.slane %v142, 6
    %v480 = vrot.slane %v143, 6
    %v481 = vrot.slane %v144, 6
    %v482 = vrot.slane %v145, 6
    %v487 = vrot.slane %v191, 4
    %v488 = vrot.slane %v192, 4
    %v489 = vrot.slane %v193, 4
    %v490 = vrot.slane %v194, 4
    %v495 = vrot.slane %v240, 2
    %v496 = vrot.slane %v241, 2
    %v497 = vrot.slane %v242, 2
    %v498 = vrot.slane %v243, 2
    %v503 = vrot.slane %v324, 6
    %v504 = vrot.slane %v325, 6
    %v505 = vrot.slane %v326, 6
    %v506 = vrot.slane %v327, 6
    %v511 = vrot.slane %v373, 4
    %v512 = vrot.slane %v374, 4
    %v513 = vrot.slane %v375, 4
    %v514 = vrot.slane %v376, 4
    %v519 = vrot.slane %v422, 2
    %v520 = vrot.slane %v423, 2
    %v521 = vrot.slane %v424, 2
    %v522 = vrot.slane %v425, 2
    %vm523 = vcmask 1041408
    %v526 = vsel %vm523, %v93, %v479
    %v529 = vsel %vm523, %v94, %v480
    %v532 = vsel %vm523, %v95, %v481
    %v535 = vsel %vm523, %v96, %v482
    %vm536 = vcmask 1043456
    %v538 = vsel %vm536, %v526, %v487
    %v540 = vsel %vm536, %v529, %v488
    %v542 = vsel %vm536, %v532, %v489
    %v544 = vsel %vm536, %v535, %v490
    %vm545 = vcmask 1045504
    %v547 = vsel %vm545, %v538, %v495
    %v550 = vsel %vm545, %v540, %v496
    %v553 = vsel %vm545, %v542, %v497
    %v556 = vsel %vm545, %v544, %v498
    %v560 = vsel %vm523, %v275, %v503
    %v563 = vsel %vm523, %v276, %v504
    %v566 = vsel %vm523, %v277, %v505
    %v569 = vsel %vm523, %v278, %v506
    %v571 = vsel %vm536, %v560, %v511
    %v573 = vsel %vm536, %v563, %v512
    %v575 = vsel %vm536, %v566, %v513
    %v577 = vsel %vm536, %v569, %v514
    %v579 = vsel %vm545, %v571, %v519
    %v582 = vsel %vm545, %v573, %v520
    %v585 = vsel %vm545, %v575, %v521
    %v588 = vsel %vm545, %v577, %v522
    %v590 = vld [vmem:[%s4] sm:$0xff]
    %592 = vset.pattern.permute.xlu0 0
    %593 = vperm.xlu0 %592, %v590
    %v594 = vpop.permute.xlu0 %593
    %vm596 = vcmask 293888
    %v598 = vsel %vm596, %v42, 0
    %v601 = vsel %vm523, %v471, 0
    %v604 = vsel %vm523, %v472, 0
    %v607 = vsel %vm523, %v473, 0
    %v610 = vsel %vm523, %v474, 0
    %612 = vmatprep.subr.bf16.mxu0 %v550
    %613 = vmatpush1.bf16.msra.mxu0 %v547
    %614 = vmatprep.subr.bf16.mxu0 %v582
    %615 = vmatpush1.bf16.msra.mxu0 %v579
    %616 = vmatprep.subr.bf16.mxu0 %v604
    %617 = vmatpush1.bf16.msra.mxu0 %v601
    %618 = vmatprep.subr.bf16.mxu0 0
    %619 = vmatpush1.bf16.msra.mxu0 0
    %620 = vmatprep.subr.bf16.mxu0 0
    %621 = vmatpush1.bf16.msra.mxu0 0
    %622 = vmatprep.subr.bf16.mxu0 0
    %623 = vmatpush1.bf16.msra.mxu0 0
    %624 = vmatprep.subr.bf16.mxu0 0
    %625 = vmatpush1.bf16.msra.mxu0 0
    %626 = vmatprep.subr.bf16.mxu0 0
    %627 = vmatpush1.bf16.msra.mxu0 0
    %628 = vmatprep.subr.bf16.mxu0 0
    %629 = vmatpush1.bf16.msra.mxu0 0
    %630 = vmatprep.subr.bf16.mxu0 0
    %631 = vmatpush1.bf16.msra.mxu0 0
    %632 = vmatprep.subr.bf16.mxu0 0
    %633 = vmatpush1.bf16.msra.mxu0 0
    %634 = vmatprep.subr.bf16.mxu0 0
    %635 = vmatpush1.bf16.msra.mxu0 0
    %636 = vmatprep.subr.bf16.mxu0 0
    %637 = vmatpush1.bf16.msra.mxu0 0
    %638 = vmatprep.subr.bf16.mxu0 0
    %639 = vmatpush1.bf16.msra.mxu0 0
    %640 = vmatprep.subr.bf16.mxu0 0
    %641 = vmatpush1.bf16.msra.mxu0 0
    %642 = vmatprep.subr.bf16.mxu0 0
    %643 = vmatpush1.bf16.msra.mxu0 0
    %644 = vmatprep.mubr.bf16.mxu0 0
    %645 = vmatmul.mubr.bf16.gmra.mrb[0].mxu0 %v598
    %v646 = vpop.f32.mrb[0].mxu0
    %v647 = vadd.f32 %v594, %v646
    %v648 = vpop.f32.mrb[0].mxu0
    %v649 = vadd.f32 %v594, %v648
    %v650 = vpop.f32.mrb[0].mxu0
    %v651 = vpop.f32.mrb[0].mxu0
    %652 = vdwg.mxu0
    %653 = vmatprep.subr.bf16.mxu0 %v556
    %654 = vmatpush1.bf16.msra.mxu0 %v553
    %655 = vmatprep.subr.bf16.mxu0 %v588
    %656 = vmatpush1.bf16.msra.mxu0 %v585
    %657 = vmatprep.subr.bf16.mxu0 %v610
    %658 = vmatpush1.bf16.msra.mxu0 %v607
    %659 = vmatprep.subr.bf16.mxu0 0
    %660 = vmatpush1.bf16.msra.mxu0 0
    %661 = vmatprep.subr.bf16.mxu0 0
    %662 = vmatpush1.bf16.msra.mxu0 0
    %663 = vmatprep.subr.bf16.mxu0 0
    %664 = vmatpush1.bf16.msra.mxu0 0
    %665 = vmatprep.subr.bf16.mxu0 0
    %666 = vmatpush1.bf16.msra.mxu0 0
    %667 = vmatprep.subr.bf16.mxu0 0
    %668 = vmatpush1.bf16.msra.mxu0 0
    %669 = vmatprep.subr.bf16.mxu0 0
    %670 = vmatpush1.bf16.msra.mxu0 0
    %671 = vmatprep.subr.bf16.mxu0 0
    %672 = vmatpush1.bf16.msra.mxu0 0
    %673 = vmatprep.subr.bf16.mxu0 0
    %674 = vmatpush1.bf16.msra.mxu0 0
    %675 = vmatprep.subr.bf16.mxu0 0
    %676 = vmatpush1.bf16.msra.mxu0 0
    %677 = vmatprep.subr.bf16.mxu0 0
    %678 = vmatpush1.bf16.msra.mxu0 0
    %679 = vmatprep.subr.bf16.mxu0 0
    %680 = vmatpush1.bf16.msra.mxu0 0
    %681 = vmatprep.subr.bf16.mxu0 0
    %682 = vmatpush1.bf16.msra.mxu0 0
    %683 = vmatprep.subr.bf16.mxu0 0
    %684 = vmatpush1.bf16.msra.mxu0 0
    %685 = vmatprep.mubr.bf16.mxu0 0
    %686 = vmatmul.mubr.bf16.gmra.mrb[0].mxu0 %v598
    %v687 = vpop.f32.mrb[0].mxu0
    %v688 = vadd.f32 %v594, %v687
    %v689 = vpop.f32.mrb[0].mxu0
    %v690 = vadd.f32 %v594, %v689
    %v691 = vpop.f32.mrb[0].mxu0
    %v692 = vpop.f32.mrb[0].mxu0
    %693 = vdwg.mxu0
    %v694 = vtanh.pop %v647
    %v695 = vtanh.pop %v649
    %v696 = vtanh.pop %v688
    %v697 = vtanh.pop %v690
    %v698 = vld [vmem:[%s5] sm:$0xf]
    %700 = vrot.lane.b32.xlu0 %v697, 17
    %v701 = vpop.permute.xlu0 %700
    %706 = vrot.lane.b32.xlu0 %v694, 17
    %v707 = vpop.permute.xlu0 %706
    %708 = vrot.lane.b32.xlu0 %v695, 17
    %v709 = vpop.permute.xlu0 %708
    %710 = vrot.lane.b32.xlu0 %v696, 17
    %v711 = vpop.permute.xlu0 %710
    %v712 = vsel %vm58, %v707, %v709
    %v713 = vsel %vm58, %v709, %v711
    %v714 = vsel %vm58, %v711, %v701
    %v719 = vsel %vm58, %v701, %v707
    %v720 = vmul.f32 %v719, %v72
    %v721 = vmul.f32 %v712, %v76
    %v722 = vmul.f32 %v713, %v80
    %v723 = vmul.f32 %v714, %v84
    %v724 = vpack.c.bf16 %v720, %v720
    %v725 = vpack.c.bf16 %v721, %v721
    %v726 = vpack.c.bf16 %v722, %v722
    %v727 = vpack.c.bf16 %v723, %v723
    %728 = vrot.lane.b32.xlu0 %v697, 16
    %v729 = vpop.permute.xlu0 %728
    %731 = vrot.lane.b32.xlu0 %v694, 16
    %v732 = vpop.permute.xlu0 %731
    %733 = vrot.lane.b32.xlu0 %v695, 16
    %v734 = vpop.permute.xlu0 %733
    %735 = vrot.lane.b32.xlu0 %v696, 16
    %v736 = vpop.permute.xlu0 %735
    %v737 = vsel %vm106, %v732, %v734
    %v738 = vsel %vm106, %v734, %v736
    %v739 = vsel %vm106, %v736, %v729
    %v744 = vsel %vm106, %v729, %v732
    %v745 = vmul.f32 %v744, %v121
    %v746 = vmul.f32 %v737, %v125
    %v747 = vmul.f32 %v738, %v129
    %v748 = vmul.f32 %v739, %v133
    %v749 = vpack.c.bf16 %v745, %v745
    %v750 = vpack.c.bf16 %v746, %v746
    %v751 = vpack.c.bf16 %v747, %v747
    %v752 = vpack.c.bf16 %v748, %v748
    %753 = vrot.lane.b32.xlu0 %v697, 15
    %v754 = vpop.permute.xlu0 %753
    %756 = vrot.lane.b32.xlu0 %v694, 15
    %v757 = vpop.permute.xlu0 %756
    %758 = vrot.lane.b32.xlu0 %v695, 15
    %v759 = vpop.permute.xlu0 %758
    %760 = vrot.lane.b32.xlu0 %v696, 15
    %v761 = vpop.permute.xlu0 %760
    %v762 = vsel %vm155, %v757, %v759
    %v763 = vsel %vm155, %v759, %v761
    %v764 = vsel %vm155, %v761, %v754
    %v769 = vsel %vm155, %v754, %v757
    %v770 = vmul.f32 %v769, %v170
    %v771 = vmul.f32 %v762, %v174
    %v772 = vmul.f32 %v763, %v178
    %v773 = vmul.f32 %v764, %v182
    %v774 = vpack.c.bf16 %v770, %v770
    %v775 = vpack.c.bf16 %v771, %v771
    %v776 = vpack.c.bf16 %v772, %v772
    %v777 = vpack.c.bf16 %v773, %v773
    %778 = vrot.lane.b32.xlu0 %v697, 1
    %v779 = vpop.permute.xlu0 %778
    %781 = vrot.lane.b32.xlu0 %v694, 1
    %v782 = vpop.permute.xlu0 %781
    %783 = vrot.lane.b32.xlu0 %v695, 1
    %v784 = vpop.permute.xlu0 %783
    %785 = vrot.lane.b32.xlu0 %v696, 1
    %v786 = vpop.permute.xlu0 %785
    %v787 = vsel %vm204, %v782, %v784
    %v788 = vsel %vm204, %v784, %v786
    %v789 = vsel %vm204, %v786, %v779
    %v794 = vsel %vm204, %v779, %v782
    %v795 = vmul.f32 %v794, %v219
    %v796 = vmul.f32 %v787, %v223
    %v797 = vmul.f32 %v788, %v227
    %v798 = vmul.f32 %v789, %v231
    %v799 = vpack.c.bf16 %v795, %v795
    %v800 = vpack.c.bf16 %v796, %v796
    %v801 = vpack.c.bf16 %v797, %v797
    %v802 = vpack.c.bf16 %v798, %v798
    %v807 = vmul.f32 %v694, %v250
    %v808 = vmul.f32 %v695, %v254
    %v809 = vmul.f32 %v696, %v258
    %v810 = vmul.f32 %v697, %v262
    %v811 = vpack.c.bf16 %v807, %v807
    %v812 = vpack.c.bf16 %v808, %v808
    %v813 = vpack.c.bf16 %v809, %v809
    %v814 = vpack.c.bf16 %v810, %v810
    %815 = vrot.lane.b32.xlu0 %v694, 127
    %v816 = vpop.permute.xlu0 %815
    %817 = vrot.lane.b32.xlu0 %v695, 127
    %v818 = vpop.permute.xlu0 %817
    %819 = vrot.lane.b32.xlu0 %v696, 127
    %v820 = vpop.permute.xlu0 %819
    %821 = vrot.lane.b32.xlu0 %v697, 127
    %v822 = vpop.permute.xlu0 %821
    %v823 = vsel %vm287, %v816, %v818
    %v824 = vsel %vm287, %v818, %v820
    %v825 = vsel %vm287, %v820, %v822
    %v831 = vsel %vm287, %v822, %v816
    %v832 = vmul.f32 %v823, %v303
    %v833 = vmul.f32 %v824, %v307
    %v834 = vmul.f32 %v825, %v311
    %v835 = vmul.f32 %v831, %v315
    %v836 = vpack.c.bf16 %v832, %v832
    %v837 = vpack.c.bf16 %v833, %v833
    %v838 = vpack.c.bf16 %v834, %v834
    %v839 = vpack.c.bf16 %v835, %v835
    %840 = vrot.lane.b32.xlu0 %v694, 113
    %v841 = vpop.permute.xlu0 %840
    %842 = vrot.lane.b32.xlu0 %v695, 113
    %v843 = vpop.permute.xlu0 %842
    %844 = vrot.lane.b32.xlu0 %v696, 113
    %v845 = vpop.permute.xlu0 %844
    %846 = vrot.lane.b32.xlu0 %v697, 113
    %v847 = vpop.permute.xlu0 %846
    %v848 = vsel %vm336, %v841, %v843
    %v849 = vsel %vm336, %v843, %v845
    %v850 = vsel %vm336, %v845, %v847
    %v856 = vsel %vm336, %v847, %v841
    %v857 = vmul.f32 %v848, %v352
    %v858 = vmul.f32 %v849, %v356
    %v859 = vmul.f32 %v850, %v360
    %v860 = vmul.f32 %v856, %v364
    %v861 = vpack.c.bf16 %v857, %v857
    %v862 = vpack.c.bf16 %v858, %v858
    %v863 = vpack.c.bf16 %v859, %v859
    %v864 = vpack.c.bf16 %v860, %v860
    %865 = vrot.lane.b32.xlu0 %v694, 112
    %v866 = vpop.permute.xlu0 %865
    %867 = vrot.lane.b32.xlu0 %v695, 112
    %v868 = vpop.permute.xlu0 %867
    %869 = vrot.lane.b32.xlu0 %v696, 112
    %v870 = vpop.permute.xlu0 %869
    %871 = vrot.lane.b32.xlu0 %v697, 112
    %v872 = vpop.permute.xlu0 %871
    %v873 = vsel %vm385, %v866, %v868
    %v874 = vsel %vm385, %v868, %v870
    %v875 = vsel %vm385, %v870, %v872
    %v881 = vsel %vm385, %v872, %v866
    %v882 = vmul.f32 %v873, %v401
    %v883 = vmul.f32 %v874, %v405
    %v884 = vmul.f32 %v875, %v409
    %v885 = vmul.f32 %v881, %v413
    %v886 = vpack.c.bf16 %v882, %v882
    %v887 = vpack.c.bf16 %v883, %v883
    %v888 = vpack.c.bf16 %v884, %v884
    %v889 = vpack.c.bf16 %v885, %v885
    %890 = vrot.lane.b32.xlu0 %v694, 111
    %v891 = vpop.permute.xlu0 %890
    %892 = vrot.lane.b32.xlu0 %v695, 111
    %v893 = vpop.permute.xlu0 %892
    %894 = vrot.lane.b32.xlu0 %v696, 111
    %v895 = vpop.permute.xlu0 %894
    %896 = vrot.lane.b32.xlu0 %v697, 111
    %v897 = vpop.permute.xlu0 %896
    %v898 = vsel %vm434, %v891, %v893
    %v899 = vsel %vm434, %v893, %v895
    %v900 = vsel %vm434, %v895, %v897
    %v906 = vsel %vm434, %v897, %v891
    %v907 = vmul.f32 %v898, %v450
    %v908 = vmul.f32 %v899, %v454
    %v909 = vmul.f32 %v900, %v458
    %v910 = vmul.f32 %v906, %v462
    %v911 = vpack.c.bf16 %v907, %v907
    %v912 = vpack.c.bf16 %v908, %v908
    %v913 = vpack.c.bf16 %v909, %v909
    %v914 = vpack.c.bf16 %v910, %v910
    %v919 = vrot.slane %v749, 4
    %v920 = vrot.slane %v750, 4
    %v921 = vrot.slane %v751, 4
    %v922 = vrot.slane %v752, 4
    %v927 = vrot.slane %v799, 4
    %v928 = vrot.slane %v800, 4
    %v929 = vrot.slane %v801, 4
    %v930 = vrot.slane %v802, 4
    %v935 = vrot.slane %v836, 4
    %v936 = vrot.slane %v837, 4
    %v937 = vrot.slane %v838, 4
    %v938 = vrot.slane %v839, 4
    %v943 = vrot.slane %v886, 4
    %v944 = vrot.slane %v887, 4
    %v945 = vrot.slane %v888, 4
    %v946 = vrot.slane %v889, 4
    %v949 = vsel %vm536, %v724, %v919
    %v953 = vsel %vm536, %v725, %v920
    %v957 = vsel %vm536, %v726, %v921
    %v961 = vsel %vm536, %v727, %v922
    %v965 = vsel %vm536, %v774, %v927
    %v969 = vsel %vm536, %v775, %v928
    %v973 = vsel %vm536, %v776, %v929
    %v977 = vsel %vm536, %v777, %v930
    %v981 = vsel %vm536, %v811, %v935
    %v985 = vsel %vm536, %v812, %v936
    %v989 = vsel %vm536, %v813, %v937
    %v993 = vsel %vm536, %v814, %v938
    %v997 = vsel %vm536, %v861, %v943
    %v1001 = vsel %vm536, %v862, %v944
    %v1005 = vsel %vm536, %v863, %v945
    %v1009 = vsel %vm536, %v864, %v946
    %v1011 = vld [vmem:[%s6] sm:$0xff]
    %1013 = vset.pattern.permute.xlu0 0
    %1014 = vperm.xlu0 %1013, %v1011
    %v1015 = vpop.permute.xlu0 %1014
    %vm1017 = vcmask 588800
    %v1019 = vsel %vm1017, %v698, 0
    %v1022 = vsel %vm536, %v911, 0
    %v1025 = vsel %vm536, %v912, 0
    %v1028 = vsel %vm536, %v913, 0
    %v1031 = vsel %vm536, %v914, 0
    %1033 = vmatprep.subr.bf16.mxu0 %v953
    %1034 = vmatpush1.bf16.msra.mxu0 %v949
    %1035 = vmatprep.subr.bf16.mxu0 %v969
    %1036 = vmatpush1.bf16.msra.mxu0 %v965
    %1037 = vmatprep.subr.bf16.mxu0 %v985
    %1038 = vmatpush1.bf16.msra.mxu0 %v981
    %1039 = vmatprep.subr.bf16.mxu0 %v1001
    %1040 = vmatpush1.bf16.msra.mxu0 %v997
    %1041 = vmatprep.subr.bf16.mxu0 %v1025
    %1042 = vmatpush1.bf16.msra.mxu0 %v1022
    %1043 = vmatprep.subr.bf16.mxu0 0
    %1044 = vmatpush1.bf16.msra.mxu0 0
    %1045 = vmatprep.subr.bf16.mxu0 0
    %1046 = vmatpush1.bf16.msra.mxu0 0
    %1047 = vmatprep.subr.bf16.mxu0 0
    %1048 = vmatpush1.bf16.msra.mxu0 0
    %1049 = vmatprep.subr.bf16.mxu0 0
    %1050 = vmatpush1.bf16.msra.mxu0 0
    %1051 = vmatprep.subr.bf16.mxu0 0
    %1052 = vmatpush1.bf16.msra.mxu0 0
    %1053 = vmatprep.subr.bf16.mxu0 0
    %1054 = vmatpush1.bf16.msra.mxu0 0
    %1055 = vmatprep.subr.bf16.mxu0 0
    %1056 = vmatpush1.bf16.msra.mxu0 0
    %1057 = vmatprep.subr.bf16.mxu0 0
    %1058 = vmatpush1.bf16.msra.mxu0 0
    %1059 = vmatprep.subr.bf16.mxu0 0
    %1060 = vmatpush1.bf16.msra.mxu0 0
    %1061 = vmatprep.subr.bf16.mxu0 0
    %1062 = vmatpush1.bf16.msra.mxu0 0
    %1063 = vmatprep.subr.bf16.mxu0 0
    %1064 = vmatpush1.bf16.msra.mxu0 0
    %1065 = vmatprep.mubr.bf16.mxu0 0
    %1066 = vmatmul.mubr.bf16.gmra.mrb[0].mxu0 %v1019
    %v1067 = vpop.f32.mrb[0].mxu0
    %v1068 = vadd.f32 %v1015, %v1067
    %v1069 = vpop.f32.mrb[0].mxu0
    %v1070 = vadd.f32 %v1015, %v1069
    %v1071 = vpop.f32.mrb[0].mxu0
    %v1072 = vpop.f32.mrb[0].mxu0
    %1073 = vdwg.mxu0
    %1074 = vmatprep.subr.bf16.mxu0 %v961
    %1075 = vmatpush1.bf16.msra.mxu0 %v957
    %1076 = vmatprep.subr.bf16.mxu0 %v977
    %1077 = vmatpush1.bf16.msra.mxu0 %v973
    %1078 = vmatprep.subr.bf16.mxu0 %v993
    %1079 = vmatpush1.bf16.msra.mxu0 %v989
    %1080 = vmatprep.subr.bf16.mxu0 %v1009
    %1081 = vmatpush1.bf16.msra.mxu0 %v1005
    %1082 = vmatprep.subr.bf16.mxu0 %v1031
    %1083 = vmatpush1.bf16.msra.mxu0 %v1028
    %1084 = vmatprep.subr.bf16.mxu0 0
    %1085 = vmatpush1.bf16.msra.mxu0 0
    %1086 = vmatprep.subr.bf16.mxu0 0
    %1087 = vmatpush1.bf16.msra.mxu0 0
    %1088 = vmatprep.subr.bf16.mxu0 0
    %1089 = vmatpush1.bf16.msra.mxu0 0
    %1090 = vmatprep.subr.bf16.mxu0 0
    %1091 = vmatpush1.bf16.msra.mxu0 0
    %1092 = vmatprep.subr.bf16.mxu0 0
    %1093 = vmatpush1.bf16.msra.mxu0 0
    %1094 = vmatprep.subr.bf16.mxu0 0
    %1095 = vmatpush1.bf16.msra.mxu0 0
    %1096 = vmatprep.subr.bf16.mxu0 0
    %1097 = vmatpush1.bf16.msra.mxu0 0
    %1098 = vmatprep.subr.bf16.mxu0 0
    %1099 = vmatpush1.bf16.msra.mxu0 0
    %1100 = vmatprep.subr.bf16.mxu0 0
    %1101 = vmatpush1.bf16.msra.mxu0 0
    %1102 = vmatprep.subr.bf16.mxu0 0
    %1103 = vmatpush1.bf16.msra.mxu0 0
    %1104 = vmatprep.subr.bf16.mxu0 0
    %1105 = vmatpush1.bf16.msra.mxu0 0
    %1106 = vmatprep.mubr.bf16.mxu0 0
    %1107 = vmatmul.mubr.bf16.gmra.mrb[0].mxu0 %v1019
    %v1108 = vpop.f32.mrb[0].mxu0
    %v1109 = vadd.f32 %v1015, %v1108
    %v1110 = vpop.f32.mrb[0].mxu0
    %v1111 = vadd.f32 %v1015, %v1110
    %v1112 = vpop.f32.mrb[0].mxu0
    %v1113 = vpop.f32.mrb[0].mxu0
    %1114 = vdwg.mxu0
    %v1115 = vld [vmem:[%s1] sm:$0xf]
    %v1117 = vlaneseq
    %v1118 = vshrl.u32 %v1117, 7
    %v1119 = vsub.s32 0, %v1118
    %v1120 = vrot.slane %v1115, %v1119
    %v1121 = vlaneseq
    %v1122 = vshrl.u32 %v1121, 7
    %v1123 = vsub.s32 1, %v1122
    %v1124 = vrot.slane %v1115, %v1123
    %v1125 = vlaneseq
    %v1126 = vshrl.u32 %v1125, 7
    %v1127 = vsub.s32 2, %v1126
    %v1128 = vrot.slane %v1115, %v1127
    %v1129 = vlaneseq
    %v1130 = vshrl.u32 %v1129, 7
    %v1131 = vsub.s32 3, %v1130
    %v1132 = vrot.slane %v1115, %v1131
    %v1137 = vmul.f32 %v1068, %v1120
    %v1138 = vmul.f32 %v1070, %v1124
    %v1139 = vmul.f32 %v1109, %v1128
    %v1140 = vmul.f32 %v1111, %v1132
    %v1141 = vtanh.pop %v1137
    %v1142 = vtanh.pop %v1138
    %v1143 = vtanh.pop %v1139
    %v1144 = vtanh.pop %v1140
    %1149 = vrot.lane.b32.xlu0 %v1141, 127
    %v1150 = vpop.permute.xlu0 %1149
    %1151 = vrot.lane.b32.xlu0 %v1142, 127
    %v1152 = vpop.permute.xlu0 %1151
    %1153 = vrot.lane.b32.xlu0 %v1143, 127
    %v1154 = vpop.permute.xlu0 %1153
    %1155 = vrot.lane.b32.xlu0 %v1144, 127
    %v1156 = vpop.permute.xlu0 %1155
    %v1157 = vsel %vm287, %v1150, %v1152
    %v1158 = vsel %vm287, %v1152, %v1154
    %v1159 = vsel %vm287, %v1154, %v1156
    %v1165 = vsel %vm287, %v1156, %v1150
    %v1166 = vadd.f32 %v1141, %v1157
    %v1167 = vadd.f32 %v1142, %v1158
    %v1168 = vadd.f32 %v1143, %v1159
    %v1169 = vadd.f32 %v1144, %v1165
    %1170 = vrot.lane.b32.xlu0 %v1141, 112
    %v1171 = vpop.permute.xlu0 %1170
    %1172 = vrot.lane.b32.xlu0 %v1142, 112
    %v1173 = vpop.permute.xlu0 %1172
    %1174 = vrot.lane.b32.xlu0 %v1143, 112
    %v1175 = vpop.permute.xlu0 %1174
    %1176 = vrot.lane.b32.xlu0 %v1144, 112
    %v1177 = vpop.permute.xlu0 %1176
    %v1178 = vsel %vm385, %v1171, %v1173
    %v1179 = vsel %vm385, %v1173, %v1175
    %v1180 = vsel %vm385, %v1175, %v1177
    %v1186 = vsel %vm385, %v1177, %v1171
    %v1187 = vadd.f32 %v1166, %v1178
    %v1188 = vadd.f32 %v1167, %v1179
    %v1189 = vadd.f32 %v1168, %v1180
    %v1190 = vadd.f32 %v1169, %v1186
    %1191 = vrot.lane.b32.xlu0 %v1141, 111
    %v1192 = vpop.permute.xlu0 %1191
    %1193 = vrot.lane.b32.xlu0 %v1142, 111
    %v1194 = vpop.permute.xlu0 %1193
    %1195 = vrot.lane.b32.xlu0 %v1143, 111
    %v1196 = vpop.permute.xlu0 %1195
    %1197 = vrot.lane.b32.xlu0 %v1144, 111
    %v1198 = vpop.permute.xlu0 %1197
    %v1199 = vsel %vm434, %v1192, %v1194
    %v1200 = vsel %vm434, %v1194, %v1196
    %v1201 = vsel %vm434, %v1196, %v1198
    %v1207 = vsel %vm434, %v1198, %v1192
    %v1208 = vadd.f32 %v1187, %v1199
    %v1209 = vadd.f32 %v1188, %v1200
    %v1210 = vadd.f32 %v1189, %v1201
    %v1211 = vadd.f32 %v1190, %v1207
    %v1212 = vmul.f32 %v1208, 0.25
    %v1213 = vmul.f32 %v1209, 0.25
    %v1214 = vmul.f32 %v1210, 0.25
    %v1215 = vmul.f32 %v1211, 0.25
    %1216 = vxpose.xlu0.b32.start [1/16] %v1212, 128
    %1217 = vxpose.xlu0.b32.cont [2/16] 0.0, 128
    %1218 = vxpose.xlu0.b32.cont [3/16] 0.0, 128
    %1219 = vxpose.xlu0.b32.cont [4/16] 0.0, 128
    %1220 = vxpose.xlu0.b32.cont [5/16] 0.0, 128
    %1221 = vxpose.xlu0.b32.cont [6/16] 0.0, 128
    %1222 = vxpose.xlu0.b32.cont [7/16] 0.0, 128
    %1223 = vxpose.xlu0.b32.cont [8/16] 0.0, 128
    %1224 = vxpose.xlu0.b32.cont [9/16] 0.0, 128
    %1225 = vxpose.xlu0.b32.cont [10/16] 0.0, 128
    %1226 = vxpose.xlu0.b32.cont [11/16] 0.0, 128
    %1227 = vxpose.xlu0.b32.cont [12/16] 0.0, 128
    %1228 = vxpose.xlu0.b32.cont [13/16] 0.0, 128
    %1229 = vxpose.xlu0.b32.cont [14/16] 0.0, 128
    %1230 = vxpose.xlu0.b32.cont [15/16] 0.0, 128
    %1231 = vxpose.xlu0.b32.end [16/16] 0.0, 128
    %v1232 = vpop.trf.xlu0
    %v1233 = vpop.trf.xlu0
    %v1234 = vpop.trf.xlu0
    %v1235 = vpop.trf.xlu0
    %v1236 = vpop.trf.xlu0
    %v1237 = vpop.trf.xlu0
    %v1238 = vpop.trf.xlu0
    %v1239 = vpop.trf.xlu0
    %v1240 = vpop.trf.xlu0
    %v1241 = vpop.trf.xlu0
    %v1242 = vpop.trf.xlu0
    %v1243 = vpop.trf.xlu0
    %v1244 = vpop.trf.xlu0
    %v1245 = vpop.trf.xlu0
    %v1246 = vpop.trf.xlu0
    %v1247 = vpop.trf.xlu0
    %1248 = vxpose.xlu0.b32.start [1/16] %v1213, 128
    %1249 = vxpose.xlu0.b32.cont [2/16] 0.0, 128
    %1250 = vxpose.xlu0.b32.cont [3/16] 0.0, 128
    %1251 = vxpose.xlu0.b32.cont [4/16] 0.0, 128
    %1252 = vxpose.xlu0.b32.cont [5/16] 0.0, 128
    %1253 = vxpose.xlu0.b32.cont [6/16] 0.0, 128
    %1254 = vxpose.xlu0.b32.cont [7/16] 0.0, 128
    %1255 = vxpose.xlu0.b32.cont [8/16] 0.0, 128
    %1256 = vxpose.xlu0.b32.cont [9/16] 0.0, 128
    %1257 = vxpose.xlu0.b32.cont [10/16] 0.0, 128
    %1258 = vxpose.xlu0.b32.cont [11/16] 0.0, 128
    %1259 = vxpose.xlu0.b32.cont [12/16] 0.0, 128
    %1260 = vxpose.xlu0.b32.cont [13/16] 0.0, 128
    %1261 = vxpose.xlu0.b32.cont [14/16] 0.0, 128
    %1262 = vxpose.xlu0.b32.cont [15/16] 0.0, 128
    %1263 = vxpose.xlu0.b32.end [16/16] 0.0, 128
    %v1264 = vpop.trf.xlu0
    %v1265 = vpop.trf.xlu0
    %v1266 = vpop.trf.xlu0
    %v1267 = vpop.trf.xlu0
    %v1268 = vpop.trf.xlu0
    %v1269 = vpop.trf.xlu0
    %v1270 = vpop.trf.xlu0
    %v1271 = vpop.trf.xlu0
    %v1272 = vpop.trf.xlu0
    %v1273 = vpop.trf.xlu0
    %v1274 = vpop.trf.xlu0
    %v1275 = vpop.trf.xlu0
    %v1276 = vpop.trf.xlu0
    %v1277 = vpop.trf.xlu0
    %v1278 = vpop.trf.xlu0
    %v1279 = vpop.trf.xlu0
    %1280 = vxpose.xlu0.b32.start [1/16] %v1214, 128
    %1281 = vxpose.xlu0.b32.cont [2/16] 0.0, 128
    %1282 = vxpose.xlu0.b32.cont [3/16] 0.0, 128
    %1283 = vxpose.xlu0.b32.cont [4/16] 0.0, 128
    %1284 = vxpose.xlu0.b32.cont [5/16] 0.0, 128
    %1285 = vxpose.xlu0.b32.cont [6/16] 0.0, 128
    %1286 = vxpose.xlu0.b32.cont [7/16] 0.0, 128
    %1287 = vxpose.xlu0.b32.cont [8/16] 0.0, 128
    %1288 = vxpose.xlu0.b32.cont [9/16] 0.0, 128
    %1289 = vxpose.xlu0.b32.cont [10/16] 0.0, 128
    %1290 = vxpose.xlu0.b32.cont [11/16] 0.0, 128
    %1291 = vxpose.xlu0.b32.cont [12/16] 0.0, 128
    %1292 = vxpose.xlu0.b32.cont [13/16] 0.0, 128
    %1293 = vxpose.xlu0.b32.cont [14/16] 0.0, 128
    %1294 = vxpose.xlu0.b32.cont [15/16] 0.0, 128
    %1295 = vxpose.xlu0.b32.end [16/16] 0.0, 128
    %v1296 = vpop.trf.xlu0
    %v1297 = vpop.trf.xlu0
    %v1298 = vpop.trf.xlu0
    %v1299 = vpop.trf.xlu0
    %v1300 = vpop.trf.xlu0
    %v1301 = vpop.trf.xlu0
    %v1302 = vpop.trf.xlu0
    %v1303 = vpop.trf.xlu0
    %v1304 = vpop.trf.xlu0
    %v1305 = vpop.trf.xlu0
    %v1306 = vpop.trf.xlu0
    %v1307 = vpop.trf.xlu0
    %v1308 = vpop.trf.xlu0
    %v1309 = vpop.trf.xlu0
    %v1310 = vpop.trf.xlu0
    %v1311 = vpop.trf.xlu0
    %1312 = vxpose.xlu0.b32.start [1/16] %v1215, 128
    %1313 = vxpose.xlu0.b32.cont [2/16] 0.0, 128
    %1314 = vxpose.xlu0.b32.cont [3/16] 0.0, 128
    %1315 = vxpose.xlu0.b32.cont [4/16] 0.0, 128
    %1316 = vxpose.xlu0.b32.cont [5/16] 0.0, 128
    %1317 = vxpose.xlu0.b32.cont [6/16] 0.0, 128
    %1318 = vxpose.xlu0.b32.cont [7/16] 0.0, 128
    %1319 = vxpose.xlu0.b32.cont [8/16] 0.0, 128
    %1320 = vxpose.xlu0.b32.cont [9/16] 0.0, 128
    %1321 = vxpose.xlu0.b32.cont [10/16] 0.0, 128
    %1322 = vxpose.xlu0.b32.cont [11/16] 0.0, 128
    %1323 = vxpose.xlu0.b32.cont [12/16] 0.0, 128
    %1324 = vxpose.xlu0.b32.cont [13/16] 0.0, 128
    %1325 = vxpose.xlu0.b32.cont [14/16] 0.0, 128
    %1326 = vxpose.xlu0.b32.cont [15/16] 0.0, 128
    %1327 = vxpose.xlu0.b32.end [16/16] 0.0, 128
    %v1328 = vpop.trf.xlu0
    %v1329 = vpop.trf.xlu0
    %v1330 = vpop.trf.xlu0
    %v1331 = vpop.trf.xlu0
    %v1332 = vpop.trf.xlu0
    %v1333 = vpop.trf.xlu0
    %v1334 = vpop.trf.xlu0
    %v1335 = vpop.trf.xlu0
    %v1336 = vpop.trf.xlu0
    %v1337 = vpop.trf.xlu0
    %v1338 = vpop.trf.xlu0
    %v1339 = vpop.trf.xlu0
    %v1340 = vpop.trf.xlu0
    %v1341 = vpop.trf.xlu0
    %v1342 = vpop.trf.xlu0
    %v1343 = vpop.trf.xlu0
    %vm1344 = vcmask 64512
    %1345 = vst.msk [vmem:[#allocation2] sm:$0xff] %vm1344, %v1232
    %1346 = vst.msk [vmem:[#allocation2 + $0x8] sm:$0xff] %vm1344, %v1233
    %1347 = vst.msk [vmem:[#allocation2 + $0x10] sm:$0xff] %vm1344, %v1234
    %1348 = vst.msk [vmem:[#allocation2 + $0x18] sm:$0xff] %vm1344, %v1235
    %1349 = vst.msk [vmem:[#allocation2 + $0x20] sm:$0xff] %vm1344, %v1236
    %1350 = vst.msk [vmem:[#allocation2 + $0x28] sm:$0xff] %vm1344, %v1237
    %1351 = vst.msk [vmem:[#allocation2 + $0x30] sm:$0xff] %vm1344, %v1238
    %1352 = vst.msk [vmem:[#allocation2 + $0x38] sm:$0xff] %vm1344, %v1239
    %1353 = vst.msk [vmem:[#allocation2 + $0x40] sm:$0xff] %vm1344, %v1240
    %1354 = vst.msk [vmem:[#allocation2 + $0x48] sm:$0xff] %vm1344, %v1241
    %1355 = vst.msk [vmem:[#allocation2 + $0x50] sm:$0xff] %vm1344, %v1242
    %1356 = vst.msk [vmem:[#allocation2 + $0x58] sm:$0xff] %vm1344, %v1243
    %1357 = vst.msk [vmem:[#allocation2 + $0x60] sm:$0xff] %vm1344, %v1244
    %1358 = vst.msk [vmem:[#allocation2 + $0x68] sm:$0xff] %vm1344, %v1245
    %1359 = vst.msk [vmem:[#allocation2 + $0x70] sm:$0xff] %vm1344, %v1246
    %1360 = vst.msk [vmem:[#allocation2 + $0x78] sm:$0xff] %vm1344, %v1247
    %1361 = vst.msk [vmem:[#allocation2 + $0x80] sm:$0xff] %vm1344, %v1264
    %1362 = vst.msk [vmem:[#allocation2 + $0x88] sm:$0xff] %vm1344, %v1265
    %1363 = vst.msk [vmem:[#allocation2 + $0x90] sm:$0xff] %vm1344, %v1266
    %1364 = vst.msk [vmem:[#allocation2 + $0x98] sm:$0xff] %vm1344, %v1267
    %1365 = vst.msk [vmem:[#allocation2 + $0xa0] sm:$0xff] %vm1344, %v1268
    %1366 = vst.msk [vmem:[#allocation2 + $0xa8] sm:$0xff] %vm1344, %v1269
    %1367 = vst.msk [vmem:[#allocation2 + $0xb0] sm:$0xff] %vm1344, %v1270
    %1368 = vst.msk [vmem:[#allocation2 + $0xb8] sm:$0xff] %vm1344, %v1271
    %1369 = vst.msk [vmem:[#allocation2 + $0xc0] sm:$0xff] %vm1344, %v1272
    %1370 = vst.msk [vmem:[#allocation2 + $0xc8] sm:$0xff] %vm1344, %v1273
    %1371 = vst.msk [vmem:[#allocation2 + $0xd0] sm:$0xff] %vm1344, %v1274
    %1372 = vst.msk [vmem:[#allocation2 + $0xd8] sm:$0xff] %vm1344, %v1275
    %1373 = vst.msk [vmem:[#allocation2 + $0xe0] sm:$0xff] %vm1344, %v1276
    %1374 = vst.msk [vmem:[#allocation2 + $0xe8] sm:$0xff] %vm1344, %v1277
    %1375 = vst.msk [vmem:[#allocation2 + $0xf0] sm:$0xff] %vm1344, %v1278
    %1376 = vst.msk [vmem:[#allocation2 + $0xf8] sm:$0xff] %vm1344, %v1279
    %1377 = vst.msk [vmem:[#allocation2 + $0x100] sm:$0xff] %vm1344, %v1296
    %1378 = vst.msk [vmem:[#allocation2 + $0x108] sm:$0xff] %vm1344, %v1297
    %1379 = vst.msk [vmem:[#allocation2 + $0x110] sm:$0xff] %vm1344, %v1298
    %1380 = vst.msk [vmem:[#allocation2 + $0x118] sm:$0xff] %vm1344, %v1299
    %1381 = vst.msk [vmem:[#allocation2 + $0x120] sm:$0xff] %vm1344, %v1300
    %1382 = vst.msk [vmem:[#allocation2 + $0x128] sm:$0xff] %vm1344, %v1301
    %1383 = vst.msk [vmem:[#allocation2 + $0x130] sm:$0xff] %vm1344, %v1302
    %1384 = vst.msk [vmem:[#allocation2 + $0x138] sm:$0xff] %vm1344, %v1303
    %1385 = vst.msk [vmem:[#allocation2 + $0x140] sm:$0xff] %vm1344, %v1304
    %1386 = vst.msk [vmem:[#allocation2 + $0x148] sm:$0xff] %vm1344, %v1305
    %1387 = vst.msk [vmem:[#allocation2 + $0x150] sm:$0xff] %vm1344, %v1306
    %1388 = vst.msk [vmem:[#allocation2 + $0x158] sm:$0xff] %vm1344, %v1307
    %1389 = vst.msk [vmem:[#allocation2 + $0x160] sm:$0xff] %vm1344, %v1308
    %1390 = vst.msk [vmem:[#allocation2 + $0x168] sm:$0xff] %vm1344, %v1309
    %1391 = vst.msk [vmem:[#allocation2 + $0x170] sm:$0xff] %vm1344, %v1310
    %1392 = vst.msk [vmem:[#allocation2 + $0x178] sm:$0xff] %vm1344, %v1311
    %1393 = vst.msk [vmem:[#allocation2 + $0x180] sm:$0xff] %vm1344, %v1328
    %1394 = vst.msk [vmem:[#allocation2 + $0x188] sm:$0xff] %vm1344, %v1329
    %1395 = vst.msk [vmem:[#allocation2 + $0x190] sm:$0xff] %vm1344, %v1330
    %1396 = vst.msk [vmem:[#allocation2 + $0x198] sm:$0xff] %vm1344, %v1331
    %1397 = vst.msk [vmem:[#allocation2 + $0x1a0] sm:$0xff] %vm1344, %v1332
    %1398 = vst.msk [vmem:[#allocation2 + $0x1a8] sm:$0xff] %vm1344, %v1333
    %1399 = vst.msk [vmem:[#allocation2 + $0x1b0] sm:$0xff] %vm1344, %v1334
    %1400 = vst.msk [vmem:[#allocation2 + $0x1b8] sm:$0xff] %vm1344, %v1335
    %1401 = vst.msk [vmem:[#allocation2 + $0x1c0] sm:$0xff] %vm1344, %v1336
    %1402 = vst.msk [vmem:[#allocation2 + $0x1c8] sm:$0xff] %vm1344, %v1337
    %1403 = vst.msk [vmem:[#allocation2 + $0x1d0] sm:$0xff] %vm1344, %v1338
    %1404 = vst.msk [vmem:[#allocation2 + $0x1d8] sm:$0xff] %vm1344, %v1339
    %1405 = vst.msk [vmem:[#allocation2 + $0x1e0] sm:$0xff] %vm1344, %v1340
    %1406 = vst.msk [vmem:[#allocation2 + $0x1e8] sm:$0xff] %vm1344, %v1341
    %1407 = vst.msk [vmem:[#allocation2 + $0x1f0] sm:$0xff] %vm1344, %v1342
    %1408 = vst.msk [vmem:[#allocation2 + $0x1f8] sm:$0xff] %vm1344, %v1343
    %v1409 = vld [vmem:[#allocation2] ss:$2 sm:$0xff]
    %s1410 = scalar_lea.vmem [#allocation2], 32
    %v1411 = vld [vmem:[%s1410] ss:$2 sm:$0xff]
    %s1412 = scalar_lea.vmem [#allocation2], 64
    %v1413 = vld [vmem:[%s1412] ss:$2 sm:$0xff]
    %s1414 = scalar_lea.vmem [#allocation2], 96
    %v1415 = vld [vmem:[%s1414] ss:$2 sm:$0xff]
    %s1416 = scalar_lea.vmem [#allocation2], 128
    %v1417 = vld [vmem:[%s1416] ss:$2 sm:$0xff]
    %s1418 = scalar_lea.vmem [#allocation2], 160
    %v1419 = vld [vmem:[%s1418] ss:$2 sm:$0xff]
    %s1420 = scalar_lea.vmem [#allocation2], 192
    %v1421 = vld [vmem:[%s1420] ss:$2 sm:$0xff]
    %s1422 = scalar_lea.vmem [#allocation2], 224
    %v1423 = vld [vmem:[%s1422] ss:$2 sm:$0xff]
    %s1424 = scalar_lea.vmem [#allocation2], 256
    %v1425 = vld [vmem:[%s1424] ss:$2 sm:$0xff]
    %s1426 = scalar_lea.vmem [#allocation2], 288
    %v1427 = vld [vmem:[%s1426] ss:$2 sm:$0xff]
    %s1428 = scalar_lea.vmem [#allocation2], 320
    %v1429 = vld [vmem:[%s1428] ss:$2 sm:$0xff]
    %s1430 = scalar_lea.vmem [#allocation2], 352
    %v1431 = vld [vmem:[%s1430] ss:$2 sm:$0xff]
    %s1432 = scalar_lea.vmem [#allocation2], 384
    %v1433 = vld [vmem:[%s1432] ss:$2 sm:$0xff]
    %s1434 = scalar_lea.vmem [#allocation2], 416
    %v1435 = vld [vmem:[%s1434] ss:$2 sm:$0xff]
    %s1436 = scalar_lea.vmem [#allocation2], 448
    %v1437 = vld [vmem:[%s1436] ss:$2 sm:$0xff]
    %s1438 = scalar_lea.vmem [#allocation2], 480
    %v1439 = vld [vmem:[%s1438] ss:$2 sm:$0xff]
    %1440 = vxpose.xlu0.b32.start [1/16] %v1409, 128
    %1441 = vxpose.xlu0.b32.cont [2/16] %v1411, 128
    %1442 = vxpose.xlu0.b32.cont [3/16] %v1413, 128
    %1443 = vxpose.xlu0.b32.cont [4/16] %v1415, 128
    %1444 = vxpose.xlu0.b32.cont [5/16] %v1417, 128
    %1445 = vxpose.xlu0.b32.cont [6/16] %v1419, 128
    %1446 = vxpose.xlu0.b32.cont [7/16] %v1421, 128
    %1447 = vxpose.xlu0.b32.cont [8/16] %v1423, 128
    %1448 = vxpose.xlu0.b32.cont [9/16] %v1425, 128
    %1449 = vxpose.xlu0.b32.cont [10/16] %v1427, 128
    %1450 = vxpose.xlu0.b32.cont [11/16] %v1429, 128
    %1451 = vxpose.xlu0.b32.cont [12/16] %v1431, 128
    %1452 = vxpose.xlu0.b32.cont [13/16] %v1433, 128
    %1453 = vxpose.xlu0.b32.cont [14/16] %v1435, 128
    %1454 = vxpose.xlu0.b32.cont [15/16] %v1437, 128
    %1455 = vxpose.xlu0.b32.end [16/16] %v1439, 128
    %v1456 = vpop.trf.xlu0
    %v1457 = vpop.trf.xlu0
    %v1458 = vpop.trf.xlu0
    %v1459 = vpop.trf.xlu0
    %v1460 = vpop.trf.xlu0
    %v1461 = vpop.trf.xlu0
    %v1462 = vpop.trf.xlu0
    %v1463 = vpop.trf.xlu0
    %v1464 = vpop.trf.xlu0
    %v1465 = vpop.trf.xlu0
    %v1466 = vpop.trf.xlu0
    %v1467 = vpop.trf.xlu0
    %v1468 = vpop.trf.xlu0
    %v1469 = vpop.trf.xlu0
    %v1470 = vpop.trf.xlu0
    %v1471 = vpop.trf.xlu0
    %1472 = vst [vmem:[#allocation6] sm:$0xff] %v1456
    // Predicated region
    $region34: #{tpu_custom_call.1} parent=1 // pred_check
      _
    $region35: #{tpu_custom_call.1} parent=1 // pred_check_branch
      %1474 = sbr.rel (0) target = $region37
    $region36: #{tpu_custom_call.1} parent=1 // pred_region
      %s1476 = ssub.s32 128, 128
      %1477 = vsyncadd [#allocation5], %s1476
      %s1479 = sshll.u32 [#allocation6], 4
      %s1480 = int_to_ptr.vmem [resolvable:$true] %s1479
      %1482 = dma.vmem_to_hbm [thread:$0]  %s1480, 128, %s7, [#allocation5]
    $region37: #{tpu_custom_call.1} parent=1 // pred_fallthru
      _
    // Predicated region
    $region38: #{tpu_custom_call.1} parent=1 // pred_check
      _
    $region39: #{tpu_custom_call.1} parent=1 // pred_check_branch
      %1484 = sbr.rel (0) target = $region41
    $region40: #{tpu_custom_call.1} parent=1 // pred_region
      %1485 = dma.done [#allocation5], 128
    $region41: #{tpu_custom_call.1} parent=1 // pred_fallthru
      _
    %1486 = vsyncpa [#allocation4], 1
    %1487 = vsyncpa [#allocation5], 1

</llo_original>
